<compile_context>
chip_gen: v6e
topology: v6e:2x2x1
jax: 0.10.0
libtpu: 0.0.40
codegen_flags: <defaults>
</compile_context>

<pallas_src>
import math
from functools import partial

import numpy as np
import jax
import jax.numpy as jnp
from jax import lax
from jax.experimental import pallas as pl
from jax.experimental.pallas import tpu as pltpu


# ---------------------------------------------------------------------------
# Kernel 1: PositionalEncodingFourier, channel-major (dim, H*W), batch-invariant
# ---------------------------------------------------------------------------
def _pe_kernel(y_ref, x_ref, inv_t_ref, w_ref, b_ref, o_ref, feats_ref, *, H2):
    inv_t = inv_t_ref[...]                       # (H2, 1)
    ang_y = inv_t * y_ref[...]                   # (H2, T)  outer product
    ang_x = inv_t * x_ref[...]                   # (H2, T)
    feats_ref[0 * H2:1 * H2, :] = jnp.sin(ang_y)
    feats_ref[1 * H2:2 * H2, :] = jnp.cos(ang_y)
    feats_ref[2 * H2:3 * H2, :] = jnp.sin(ang_x)
    feats_ref[3 * H2:4 * H2, :] = jnp.cos(ang_x)
    out = jnp.dot(w_ref[...], feats_ref[...], preferred_element_type=jnp.float32)
    o_ref[...] = (out + b_ref[...]).astype(o_ref.dtype)


def _choose_tile_h(H, W):
    """Largest TH dividing H with TH*W a multiple of 128 and >= 2 grid steps."""
    for th in range(H // 2, 0, -1):
        if H % th == 0 and (th * W) % 128 == 0:
            return th
    return H


def positional_encoding_fourier_cn(H, W, weight, bias, *, hidden_dim=32,
                                   temperature=10000.0):
    """Channel-major (dim, H*W) fourier positional encoding."""
    dim = weight.shape[0]
    assert weight.shape == (dim, 2 * hidden_dim) and hidden_dim % 2 == 0
    H2 = hidden_dim // 2
    TH = _choose_tile_h(H, W)

    scale = 2.0 * math.pi
    eps = 1e-6
    sy = scale / (float(H) + eps)
    sx = scale / (float(W) + eps)

    # unique inverse frequencies (dim_t is pairwise equal in the reference)
    j = np.arange(H2, dtype=np.float64)
    inv_t = jnp.asarray(
        (1.0 / (float(temperature) ** (2.0 * j / hidden_dim))).reshape(H2, 1),
        jnp.float32)

    # permute conv-weight columns to the [sin_y | cos_y | sin_x | cos_x] slab
    ji = np.arange(H2)
    orig_idx = np.concatenate([2 * ji, 2 * ji + 1,
                               hidden_dim + 2 * ji, hidden_dim + 2 * ji + 1])
    w_perm = jnp.asarray(weight, jnp.float32)[:, orig_idx]
    b_col = jnp.asarray(bias, jnp.float32).reshape(dim, 1)

    hh, ww = np.meshgrid(np.arange(H, dtype=np.float64),
                         np.arange(W, dtype=np.float64), indexing="ij")
    y_full = jnp.asarray(((hh + 1.0) * sy).reshape(1, H * W), jnp.float32)
    x_full = jnp.asarray(((ww + 1.0) * sx).reshape(1, H * W), jnp.float32)

    kernel = partial(_pe_kernel, H2=H2)
    return pl.pallas_call(
        kernel,
        out_shape=jax.ShapeDtypeStruct((dim, H * W), jnp.float32),
        grid_spec=pltpu.PrefetchScalarGridSpec(
            num_scalar_prefetch=0,
            grid=(H // TH,),
            in_specs=[
                pl.BlockSpec((1, TH * W), lambda hi: (0, hi)),         # y coords
                pl.BlockSpec((1, TH * W), lambda hi: (0, hi)),         # x coords
                pl.BlockSpec((H2, 1), lambda hi: (0, 0)),              # 1/dim_t
                pl.BlockSpec((dim, 2 * hidden_dim), lambda hi: (0, 0)),  # weight
                pl.BlockSpec((dim, 1), lambda hi: (0, 0)),             # bias
            ],
            out_specs=pl.BlockSpec((dim, TH * W), lambda hi: (0, hi)),
            scratch_shapes=[pltpu.VMEM((2 * hidden_dim, TH * W), jnp.float32)],
        ),
        compiler_params=pltpu.CompilerParams(
            dimension_semantics=("parallel",)),
    )(y_full, x_full, inv_t, w_perm, b_col)


# ---------------------------------------------------------------------------
# Kernel 2: fused SplitTransposeBlock body (per batch image, channel-major)
# ---------------------------------------------------------------------------
_ERF_P = 0.3275911
_ERF_A = (0.254829592, -0.284496736, 1.421413741, -1.453152027, 1.061405429)


def _erf_approx(x):
    """Abramowitz & Stegun 7.1.26 erf approximation (|err| < 1.5e-7)."""
    a1, a2, a3, a4, a5 = _ERF_A
    ax = jnp.abs(x)
    t = 1.0 / (1.0 + _ERF_P * ax)
    poly = ((((a5 * t + a4) * t + a3) * t + a2) * t + a1) * t
    y = 1.0 - poly * jnp.exp(-ax * ax)
    return jnp.where(x >= 0, y, -y)


def _gelu_exact(x):
    return 0.5 * x * (1.0 + _erf_approx(x * (1.0 / math.sqrt(2.0))))


def _layernorm_cn(x_cn, w_col, b_col, eps):
    """LayerNorm over the channel (sublane) axis of a (C, N) slab."""
    mu = jnp.mean(x_cn, axis=0, keepdims=True)
    xc = x_cn - mu
    var = jnp.mean(xc * xc, axis=0, keepdims=True)
    return xc * lax.rsqrt(var + eps) * w_col + b_col


def _stb_kernel(x_ref, pos_ref, s_ref, cw_ref, cb_ref, hb_ref, temp_ref,
                lnx_w_ref, lnx_b_ref, qkv_w_ref, qkv_b_ref,
                proj_w_ref, proj_b_ref, gxca_ref,
                ln_w_ref, ln_b_ref, fc1_w_ref, fc1_b_ref,
                fc2_w_ref, fc2_b_ref, g_ref,
                o_ref, tok_ref, *, C, N, width, n_convs, eps):
    x = x_ref[0]                                     # (C, N)  == shortcut

    # ---- split depthwise 3x3 convs (each tap = pixel-shift matmul on MXU) --
    tok_ref[...] = x                                 # pass-through chunk(s)
    cw = cw_ref[...]                                 # (n_convs, width, 9)
    cb = cb_ref[...]                                 # (n_convs, width, 1)
    sp = x[0:width, :]
    for i in range(n_convs):
        if i > 0:
            sp = sp + x[i * width:(i + 1) * width, :]
        acc = jnp.zeros((width, N), jnp.float32)
        for t in range(9):
            shifted = jnp.dot(sp, s_ref[t], preferred_element_type=jnp.float32)
            acc = acc + cw[i, :, t:t + 1] * shifted
        sp = acc + cb[i]
        tok_ref[i * width:(i + 1) * width, :] = sp

    tokens = tok_ref[...] + pos_ref[...]             # (C, N) + positional enc

    # ---- XCA branch: LN -> qkv -> cross-covariance attention -> proj -------
    ln1 = _layernorm_cn(tokens, lnx_w_ref[...], lnx_b_ref[...], eps)
    qkv = jnp.dot(qkv_w_ref[...], ln1,
                  preferred_element_type=jnp.float32) + qkv_b_ref[...]  # (3C,N)
    q = qkv[0:C, :]
    k = qkv[C:2 * C, :]
    v = qkv[2 * C:3 * C, :]
    qn = q / jnp.maximum(jnp.sqrt(jnp.sum(q * q, axis=1, keepdims=True)), 1e-12)
    kn = k / jnp.maximum(jnp.sqrt(jnp.sum(k * k, axis=1, keepdims=True)), 1e-12)
    gram = lax.dot_general(qn, kn, (((1,), (1,)), ((), ())),
                           preferred_element_type=jnp.float32)          # (C, C)
    logits = gram * temp_ref[...] + hb_ref[...]      # per-head temp + head mask
    m = jnp.max(logits, axis=1, keepdims=True)
    e = jnp.exp(logits - m)
    attn = e / jnp.sum(e, axis=1, keepdims=True)     # block-diagonal softmax
    att_o = jnp.dot(attn, v, preferred_element_type=jnp.float32)        # (C, N)
    proj = jnp.dot(proj_w_ref[...], att_o,
                   preferred_element_type=jnp.float32) + proj_b_ref[...]
    xmid = tokens + gxca_ref[...] * proj             # layer-scale residual

    # ---- MLP branch: LN -> fc1 -> GELU -> fc2 -> layer scale ---------------
    ln2 = _layernorm_cn(xmid, ln_w_ref[...], ln_b_ref[...], eps)
    h = jnp.dot(fc1_w_ref[...], ln2,
                preferred_element_type=jnp.float32) + fc1_b_ref[...]    # (hid,N)
    h = _gelu_exact(h)
    y = jnp.dot(fc2_w_ref[...], h,
                preferred_element_type=jnp.float32) + fc2_b_ref[...]    # (C, N)

    o_ref[0] = (x + g_ref[...] * y).astype(o_ref.dtype)   # outer shortcut add


def _make_shift_matrices(H, W):
    """(9, N, N) 0/1 matrices: x_cn @ S[k] == pixel-shift for 3x3 tap k."""
    N = H * W
    S = np.zeros((9, N, N), np.float32)
    for di in range(3):
        for dj in range(3):
            k = di * 3 + dj
            for i in range(H):
                si = i + di - 1
                if si < 0 or si >= H:
                    continue
                for jj in range(W):
                    sj = jj + dj - 1
                    if sj < 0 or sj >= W:
                        continue
                    S[k, si * W + sj, i * W + jj] = 1.0
    return S


def _const_spec(arr):
    nd = arr.ndim
    return pl.BlockSpec(arr.shape, lambda b, _n=nd: (0,) * _n)


def split_transpose_block(x, p, *, num_heads=8, pe_hidden_dim=32,
                          pe_temperature=10000.0, eps=1e-6):
    """SplitTransposeBlock forward.  x: (B, C, H, W) float32 -> (B, C, H, W)."""
    B, C, H, W = x.shape
    N = H * W
    n_convs, width = p["conv_w"].shape[0], p["conv_w"].shape[1]
    hd = C // num_heads
    assert C == width * (n_convs + 1) and C % num_heads == 0
    assert N % 128 == 0 and C % 8 == 0

    # batch-invariant positional encoding, channel-major (C, N)
    pos_cn = positional_encoding_fourier_cn(
        H, W, p["pe_w"], p["pe_b"], hidden_dim=pe_hidden_dim,
        temperature=pe_temperature)

    f32 = lambda a: jnp.asarray(a, jnp.float32)
    col = lambda a: jnp.asarray(a, jnp.float32).reshape(-1, 1)

    s_mats = jnp.asarray(_make_shift_matrices(H, W))            # (9, N, N)
    conv_w = f32(p["conv_w"]).reshape(n_convs, width, 9)
    conv_b = f32(p["conv_b"]).reshape(n_convs, width, 1)

    head_of = np.arange(C) // hd
    head_bias = jnp.asarray(
        np.where(head_of[:, None] == head_of[None, :], 0.0, -1e30), jnp.float32)
    temp_rows = jnp.repeat(f32(p["temp"]).reshape(num_heads), hd).reshape(C, 1)

    x_cn = f32(x).reshape(B, C, N)

    operands = (x_cn, pos_cn, s_mats, conv_w, conv_b, head_bias, temp_rows,
                col(p["lnx_w"]), col(p["lnx_b"]),
                f32(p["qkv_w"]), col(p["qkv_b"]),
                f32(p["proj_w"]), col(p["proj_b"]), col(p["gamma_xca"]),
                col(p["ln_w"]), col(p["ln_b"]),
                f32(p["fc1_w"]), col(p["fc1_b"]),
                f32(p["fc2_w"]), col(p["fc2_b"]), col(p["gamma"]))

    in_specs = [pl.BlockSpec((1, C, N), lambda b: (b, 0, 0))]
    in_specs += [_const_spec(a) for a in operands[1:]]

    kernel = partial(_stb_kernel, C=C, N=N, width=width, n_convs=n_convs,
                     eps=eps)

    out_cn = pl.pallas_call(
        kernel,
        out_shape=jax.ShapeDtypeStruct((B, C, N), jnp.float32),
        grid_spec=pltpu.PrefetchScalarGridSpec(
            num_scalar_prefetch=0,
            grid=(B,),
            in_specs=in_specs,
            out_specs=pl.BlockSpec((1, C, N), lambda b: (b, 0, 0)),
            scratch_shapes=[pltpu.VMEM((C, N), jnp.float32)],
        ),
        compiler_params=pltpu.CompilerParams(
            dimension_semantics=("parallel",),
            vmem_limit_bytes=32 * 1024 * 1024),
    )(*operands)

    return out_cn.reshape(B, C, H, W)


# ---------------------------------------------------------------------------
# Pure-JAX reference (transcription of the PyTorch forward) for validation
# ---------------------------------------------------------------------------
def _reference_pe(shape, weight, bias, *, hidden_dim=32, temperature=10000.0):
    B, H, W = shape
    scale = 2.0 * math.pi
    eps = 1e-6
    ones = jnp.ones((B, H, W), jnp.float32)
    y_embed = jnp.cumsum(ones, axis=1)
    x_embed = jnp.cumsum(ones, axis=2)
    y_embed = y_embed / (y_embed[:, -1:, :] + eps) * scale
    x_embed = x_embed / (x_embed[:, :, -1:] + eps) * scale
    dim_t = jnp.arange(hidden_dim, dtype=jnp.float32)
    dim_t = temperature ** (2.0 * jnp.floor(dim_t / 2.0) / hidden_dim)
    pos_x = x_embed[..., None] / dim_t
    pos_y = y_embed[..., None] / dim_t
    pos_x = jnp.stack([jnp.sin(pos_x[..., 0::2]), jnp.cos(pos_x[..., 1::2])],
                      axis=4).reshape(B, H, W, hidden_dim)
    pos_y = jnp.stack([jnp.sin(pos_y[..., 0::2]), jnp.cos(pos_y[..., 1::2])],
                      axis=4).reshape(B, H, W, hidden_dim)
    pos = jnp.concatenate([pos_y, pos_x], axis=3)
    out = jnp.einsum("bhwk,ck->bchw", pos, weight)
    return out + bias[None, :, None, None]


def _layernorm_ref(x, w, b, eps):
    mu = jnp.mean(x, axis=-1, keepdims=True)
    xc = x - mu
    var = jnp.mean(xc * xc, axis=-1, keepdims=True)
    return xc * lax.rsqrt(var + eps) * w + b


def _reference_block(x, p, *, num_heads, pe_hidden_dim, pe_temperature,
                     eps=1e-6):
    B, C, H, W = x.shape
    N = H * W
    n_convs, width = p["conv_w"].shape[0], p["conv_w"].shape[1]
    shortcut = x

    chunks = jnp.split(x, n_convs + 1, axis=1)
    spo = []
    sp = chunks[0]
    for i in range(n_convs):
        if i > 0:
            sp = sp + chunks[i]
        sp = lax.conv_general_dilated(
            sp, p["conv_w"][i][:, None, :, :], window_strides=(1, 1),
            padding=((1, 1), (1, 1)),
            dimension_numbers=("NCHW", "OIHW", "NCHW"),
            feature_group_count=width)
        sp = sp + p["conv_b"][i][None, :, None, None]
        spo.append(sp)
    spo.append(chunks[-1])
    xt = jnp.concatenate(spo, axis=1).reshape(B, C, N).transpose(0, 2, 1)

    pos = _reference_pe((B, H, W), p["pe_w"], p["pe_b"],
                        hidden_dim=pe_hidden_dim, temperature=pe_temperature)
    xt = xt + pos.reshape(B, C, N).transpose(0, 2, 1)

    ln = _layernorm_ref(xt, p["lnx_w"], p["lnx_b"], eps)
    qkv = ln @ p["qkv_w"].T + p["qkv_b"]
    hd = C // num_heads
    qkv = qkv.reshape(B, N, 3, num_heads, hd).transpose(2, 0, 3, 4, 1)
    q, k, v = qkv[0], qkv[1], qkv[2]
    qn = q / jnp.maximum(jnp.linalg.norm(q, axis=-1, keepdims=True), 1e-12)
    kn = k / jnp.maximum(jnp.linalg.norm(k, axis=-1, keepdims=True), 1e-12)
    attn = (qn @ jnp.swapaxes(kn, -2, -1)) * p["temp"][None]
    attn = jax.nn.softmax(attn, axis=-1)
    xa = (attn @ v).transpose(0, 3, 1, 2).reshape(B, N, C)
    xa = xa @ p["proj_w"].T + p["proj_b"]
    xt = xt + p["gamma_xca"] * xa

    ln2 = _layernorm_ref(xt, p["ln_w"], p["ln_b"], eps)
    h = ln2 @ p["fc1_w"].T + p["fc1_b"]
    h = 0.5 * h * (1.0 + lax.erf(h / math.sqrt(2.0)))       # exact GELU
    y = h @ p["fc2_w"].T + p["fc2_b"]
    y = p["gamma"] * y
    y = y.transpose(0, 2, 1).reshape(B, C, H, W)
    return shortcut + y


# ---------------------------------------------------------------------------
if __name__ == "__main__":
    B, H, W = 2, 16, 16
    dim = 64                 # block channels
    num_scales = 2           # -> 1 depthwise conv on the first channel chunk
    num_heads = 8
    expand_ratio = 4
    pe_hidden = 32

    n_convs = max(1, num_scales - 1)
    width = dim // (n_convs + 1)
    hidden = expand_ratio * dim

    key = jax.random.PRNGKey(0)
    ks = jax.random.split(key, 21)
    nrm = lambda k, s, sc: sc * jax.random.normal(k, s, jnp.float32)

    p = dict(
        conv_w=nrm(ks[0], (n_convs, width, 3, 3), 0.2),
        conv_b=nrm(ks[1], (n_convs, width), 0.1),
        pe_w=nrm(ks[2], (dim, 2 * pe_hidden), 0.12),
        pe_b=nrm(ks[3], (dim,), 0.1),
        lnx_w=1.0 + nrm(ks[4], (dim,), 0.1),
        lnx_b=nrm(ks[5], (dim,), 0.1),
        temp=1.0 + nrm(ks[6], (num_heads, 1, 1), 0.2),
        qkv_w=nrm(ks[7], (3 * dim, dim), 0.125),
        qkv_b=nrm(ks[8], (3 * dim,), 0.02),
        proj_w=nrm(ks[9], (dim, dim), 0.125),
        proj_b=nrm(ks[10], (dim,), 0.02),
        gamma_xca=nrm(ks[11], (dim,), 0.1),
        ln_w=1.0 + nrm(ks[12], (dim,), 0.1),
        ln_b=nrm(ks[13], (dim,), 0.1),
        fc1_w=nrm(ks[14], (hidden, dim), 0.125),
        fc1_b=nrm(ks[15], (hidden,), 0.02),
        fc2_w=nrm(ks[16], (dim, hidden), 0.0625),
        fc2_b=nrm(ks[17], (dim,), 0.02),
        gamma=nrm(ks[18], (dim,), 0.1),
    )
    x = jax.random.normal(ks[19], (B, dim, H, W), jnp.float32)

    out = split_transpose_block(x, p, num_heads=num_heads,
                                pe_hidden_dim=pe_hidden,
                                pe_temperature=10000.0)
    out = jax.block_until_ready(out)

    # reference at full f32 matmul precision
    with jax.default_matmul_precision("float32"):
        ref = jax.block_until_ready(
            _reference_block(x, p, num_heads=num_heads,
                             pe_hidden_dim=pe_hidden,
                             pe_temperature=10000.0))

    assert out.shape == (B, dim, H, W), out.shape
    max_err = float(jnp.max(jnp.abs(out - ref)))
    assert max_err < 3e-3, f"max abs err {max_err}"
    print("KERNEL_OK")
</pallas_src>

<mosaic_0001>
module attributes {stable_mosaic.version = 11 : i64} {
  func.func @_pe_kernel(%arg0: i32, %arg1: memref<1x128xf32, #tpu.memory_space<vmem>>, %arg2: memref<1x128xf32, #tpu.memory_space<vmem>>, %arg3: memref<16x1xf32, #tpu.memory_space<vmem>>, %arg4: memref<64x64xf32, #tpu.memory_space<vmem>>, %arg5: memref<64x1xf32, #tpu.memory_space<vmem>>, %arg6: memref<64x128xf32, #tpu.memory_space<vmem>>, %arg7: memref<64x128xf32, #tpu.memory_space<vmem>>) attributes {dimension_semantics = [#tpu.dimension_semantics<parallel>], iteration_bounds = array<i64: 2>, scalar_prefetch = 0 : i64, scratch_operands = 1 : i64, tpu.core_type = #tpu.core_type<tc>, window_params = [{transform_indices = @transform_0, window_bounds = array<i64: 1, 128>}, {transform_indices = @transform_1, window_bounds = array<i64: 1, 128>}, {pipeline_mode = #tpu.pipeline_mode<synchronous>, transform_indices = @transform_2, window_bounds = array<i64: 16, 1>}, {pipeline_mode = #tpu.pipeline_mode<synchronous>, transform_indices = @transform_3, window_bounds = array<i64: 64, 64>}, {pipeline_mode = #tpu.pipeline_mode<synchronous>, transform_indices = @transform_4, window_bounds = array<i64: 64, 1>}, {transform_indices = @transform_5, window_bounds = array<i64: 64, 128>}]} {
    %c0 = arith.constant 0 : index
    %c0_0 = arith.constant 0 : index
    %0 = vector.load %arg3[%c0, %c0_0] : memref<16x1xf32, #tpu.memory_space<vmem>>, vector<16x1xf32>
    %c0_1 = arith.constant 0 : index
    %c0_2 = arith.constant 0 : index
    %1 = vector.load %arg1[%c0_1, %c0_2] : memref<1x128xf32, #tpu.memory_space<vmem>>, vector<1x128xf32>
    %2 = vector.broadcast %0 : vector<16x1xf32> to vector<16x128xf32>
    %3 = vector.broadcast %1 : vector<1x128xf32> to vector<16x128xf32>
    %4 = arith.mulf %2, %3 : vector<16x128xf32>
    %c0_3 = arith.constant 0 : index
    %c0_4 = arith.constant 0 : index
    %5 = vector.load %arg2[%c0_3, %c0_4] : memref<1x128xf32, #tpu.memory_space<vmem>>, vector<1x128xf32>
    %6 = vector.broadcast %0 : vector<16x1xf32> to vector<16x128xf32>
    %7 = vector.broadcast %5 : vector<1x128xf32> to vector<16x128xf32>
    %8 = arith.mulf %6, %7 : vector<16x128xf32>
    %9 = math.sin %4 : vector<16x128xf32>
    %c0_5 = arith.constant 0 : index
    %c0_6 = arith.constant 0 : index
    %10 = vector.load %arg7[%c0_5, %c0_6] : memref<64x128xf32, #tpu.memory_space<vmem>>, vector<16x128xf32>
    tpu.vector_store %arg7[%c0_5, %c0_6], %9 {strides = array<i32>} : memref<64x128xf32, #tpu.memory_space<vmem>>, vector<16x128xf32>,
    %11 = math.cos %4 : vector<16x128xf32>
    %c16 = arith.constant 16 : index
    %c0_7 = arith.constant 0 : index
    %12 = vector.load %arg7[%c16, %c0_7] : memref<64x128xf32, #tpu.memory_space<vmem>>, vector<16x128xf32>
    tpu.vector_store %arg7[%c16, %c0_7], %11 {strides = array<i32>} : memref<64x128xf32, #tpu.memory_space<vmem>>, vector<16x128xf32>,
    %13 = math.sin %8 : vector<16x128xf32>
    %c32 = arith.constant 32 : index
    %c0_8 = arith.constant 0 : index
    %14 = vector.load %arg7[%c32, %c0_8] : memref<64x128xf32, #tpu.memory_space<vmem>>, vector<16x128xf32>
    tpu.vector_store %arg7[%c32, %c0_8], %13 {strides = array<i32>} : memref<64x128xf32, #tpu.memory_space<vmem>>, vector<16x128xf32>,
    %15 = math.cos %8 : vector<16x128xf32>
    %c48 = arith.constant 48 : index
    %c0_9 = arith.constant 0 : index
    %16 = vector.load %arg7[%c48, %c0_9] : memref<64x128xf32, #tpu.memory_space<vmem>>, vector<16x128xf32>
    tpu.vector_store %arg7[%c48, %c0_9], %15 {strides = array<i32>} : memref<64x128xf32, #tpu.memory_space<vmem>>, vector<16x128xf32>,
    %c0_10 = arith.constant 0 : index
    %c0_11 = arith.constant 0 : index
    %17 = vector.load %arg4[%c0_10, %c0_11] : memref<64x64xf32, #tpu.memory_space<vmem>>, vector<64x64xf32>
    %c0_12 = arith.constant 0 : index
    %c0_13 = arith.constant 0 : index
    %18 = vector.load %arg7[%c0_12, %c0_13] : memref<64x128xf32, #tpu.memory_space<vmem>>, vector<64x128xf32>
    %cst = arith.constant dense<0.000000e+00> : vector<64x128xf32>
    %19 = tpu.matmul %17, %18, %cst {dimension_numbers = #tpu.dot_dimension_numbers<[1], [0], [0], [1], [0, 0, 1, 1], [], []>} : vector<64x64xf32>, vector<64x128xf32>, vector<64x128xf32> -> vector<64x128xf32>
    %c0_14 = arith.constant 0 : index
    %c0_15 = arith.constant 0 : index
    %20 = vector.load %arg5[%c0_14, %c0_15] : memref<64x1xf32, #tpu.memory_space<vmem>>, vector<64x1xf32>
    %21 = vector.broadcast %20 : vector<64x1xf32> to vector<64x128xf32>
    %22 = arith.addf %19, %21 : vector<64x128xf32>
    %c0_16 = arith.constant 0 : index
    %c0_17 = arith.constant 0 : index
    %23 = vector.load %arg6[%c0_16, %c0_17] : memref<64x128xf32, #tpu.memory_space<vmem>>, vector<64x128xf32>
    tpu.vector_store %arg6[%c0_16, %c0_17], %22 {strides = array<i32>} : memref<64x128xf32, #tpu.memory_space<vmem>>, vector<64x128xf32>,
    return
  }
  func.func @transform_0(%arg0: i32) -> (i32, i32) {
    %c0_i32 = arith.constant 0 : i32
    %c0_i32_0 = arith.constant 0 : i32
    return %c0_i32, %arg0 : i32, i32
  }
  func.func @transform_1(%arg0: i32) -> (i32, i32) {
    %c0_i32 = arith.constant 0 : i32
    %c0_i32_0 = arith.constant 0 : i32
    return %c0_i32, %arg0 : i32, i32
  }
  func.func @transform_2(%arg0: i32) -> (i32, i32) {
    %c0_i32 = arith.constant 0 : i32
    %c0_i32_0 = arith.constant 0 : i32
    %c0_i32_1 = arith.constant 0 : i32
    return %c0_i32, %c0_i32_0 : i32, i32
  }
  func.func @transform_3(%arg0: i32) -> (i32, i32) {
    %c0_i32 = arith.constant 0 : i32
    %c0_i32_0 = arith.constant 0 : i32
    %c0_i32_1 = arith.constant 0 : i32
    return %c0_i32, %c0_i32_0 : i32, i32
  }
  func.func @transform_4(%arg0: i32) -> (i32, i32) {
    %c0_i32 = arith.constant 0 : i32
    %c0_i32_0 = arith.constant 0 : i32
    %c0_i32_1 = arith.constant 0 : i32
    return %c0_i32, %c0_i32_0 : i32, i32
  }
  func.func @transform_5(%arg0: i32) -> (i32, i32) {
    %c0_i32 = arith.constant 0 : i32
    %c0_i32_0 = arith.constant 0 : i32
    return %c0_i32, %arg0 : i32, i32
  }
}

</mosaic_0001>

<llo_original>
// kernel: tpu_custom_call.1
$region0: #{tpu_custom_call.1}
  #allocation0 [shape = 'u32[]', space=smem, size = 0x4, offset = 0x4, fixed_abs, tag = 'smem constant byte address 0x4 - core index']
  #allocation1 [shape = 'u32[144,128]{1,0:T(1,128)}', space=vmem, size = 0x12000, scoped, tag = 'internal scratch']
  #allocation2 [shape = 'f32[64,128]{1,0:T(8,128)}', space=vmem, size = 0x8000, scoped, tag = 'scratch operand']
  %s0 = inlined_call_operand.vmem [shape: f32[1,256], index: 0, kind: input, shape index: {}]
  %s1 = inlined_call_operand.vmem [shape: f32[1,256], index: 1, kind: input, shape index: {}]
  %s2 = inlined_call_operand.vmem [shape: f32[16,1], index: 2, kind: input, shape index: {}]
  %s3 = inlined_call_operand.vmem [shape: f32[64,64], index: 3, kind: input, shape index: {}]
  %s4 = inlined_call_operand.vmem [shape: f32[64,1], index: 4, kind: input, shape index: {}]
  %s5 = inlined_call_operand.hbm [shape: f32[64,256], index: 5, kind: output, shape index: {}]
  %s6 = sld [smem:[#allocation0]]
  $region53: #{tpu_custom_call.1} parent=0
    _
  %s8 = ssub.s32 1, %s6
  %s9 = scalar_select 0, %s8, %s6
  $region1: #{tpu_custom_call.1} parent=0
    #allocation3 [shape = 'u8[65536]{0}', space=vmem, size = 0x10000, scoped, tag = 'output window, operand 0']
    #allocation4 [shape = 's32[2]{0}', space=sflag, size = 0x8, scoped, tag = 'scoped memory for tpu_custom_call.1']
    %10 = vsyncpa [#allocation4], 0
    %s11 = scalar_lea.sflag [#allocation4], 1
    %12 = vsyncpa %s11, 0
    loop: start=0, step=1, limit=4
    $region2: #{tpu_custom_call.1} parent=1 // loop_pre_header
      _
    $region3: #{tpu_custom_call.1} parent=1 // loop_header
      %s14 = sphi 0, %s18
      %p15 = scmp.ge.s32.totalorder %s14, 4
      %s24 = sphi 0, %s26
      %s27 = sphi 0, %s24
      %s28 = sphi 0, %s27
      %s44 = sphi 0, %s28
      %s50 = sphi 0, %s52
      %s53 = sphi 0, %s50
      %s54 = sphi 0, %s53
      %s70 = sphi 0, %s54
      %s74 = sphi 0, %s74
      %s76 = sphi 0, %s74
      %s77 = sphi 0, %s76
      %s91 = sphi 0, %s77
      %s95 = sphi 0, %s95
      %s97 = sphi 0, %s95
      %s98 = sphi 0, %s97
      %s112 = sphi 0, %s98
      %s116 = sphi 0, %s116
      %s118 = sphi 0, %s116
      %s119 = sphi 0, %s118
      %s133 = sphi 0, %s119
      %s139 = sphi 0, %s141
      %s142 = sphi 0, %s139
      %s143 = sphi 0, %s142
      %s159 = sphi 0, %s143
    $region4: #{tpu_custom_call.1} parent=1 // loop_header_branch
      %17 = sbr.rel (%p15) target = $region8
    $region5: #{tpu_custom_call.1} parent=1 // loop_body
      %s19 = ssub.s32 %s14, 1
      %s20 = ssub.s32 %s14, 2
      %s21 = sadd.s32 %s14, 1
      %s22 = ssub.s32 %s14, %s21
      %p23 = scmp.eq.s32.totalorder %s22, 0
      %s25 = sadd.s32 %s24, 1
      %s26 = scalar_select %p23, %s24, %s25
      %p29 = pneg %p23
      %p30 = scmp.eq.s32.totalorder %s14, 1
      %p31 = por %p29, %p30
      %p32 = scmp.ne.s32.totalorder %s24, %s27
      %p33 = scmp.eq.s32.totalorder %s14, 0
      %p34 = por %p32, %p33
      %p35 = scmp.ne.s32.totalorder %s24, %s27
      %p36 = scmp.eq.s32.totalorder %s19, 1
      %p37 = por %p35, %p36
      %p38 = scmp.ne.s32.totalorder %s27, %s28
      %p39 = scmp.eq.s32.totalorder %s19, 0
      %p40 = por %p38, %p39
      %p41 = scmp.ne.s32.totalorder %s27, %s28
      %p42 = scmp.eq.s32.totalorder %s20, 1
      %p43 = por %p41, %p42
      %p45 = scmp.ne.s32.totalorder %s28, %s44
      %p46 = scmp.eq.s32.totalorder %s20, 0
      %p47 = por %p45, %p46
      %s48 = ssub.s32 %s14, %s21
      %p49 = scmp.eq.s32.totalorder %s48, 0
      %s51 = sadd.s32 %s50, 1
      %s52 = scalar_select %p49, %s50, %s51
      %p55 = pneg %p49
      %p56 = scmp.eq.s32.totalorder %s14, 1
      %p57 = por %p55, %p56
      %p58 = scmp.ne.s32.totalorder %s50, %s53
      %p59 = scmp.eq.s32.totalorder %s14, 0
      %p60 = por %p58, %p59
      %p61 = scmp.ne.s32.totalorder %s50, %s53
      %p62 = scmp.eq.s32.totalorder %s19, 1
      %p63 = por %p61, %p62
      %p64 = scmp.ne.s32.totalorder %s53, %s54
      %p65 = scmp.eq.s32.totalorder %s19, 0
      %p66 = por %p64, %p65
      %p67 = scmp.ne.s32.totalorder %s53, %s54
      %p68 = scmp.eq.s32.totalorder %s20, 1
      %p69 = por %p67, %p68
      %p71 = scmp.ne.s32.totalorder %s54, %s70
      %p72 = scmp.eq.s32.totalorder %s20, 0
      %p73 = por %p71, %p72
      %s75 = sadd.s32 %s74, 1
      %p78 = scmp.eq.s32.totalorder %s14, 1
      %p79 = scmp.ne.s32.totalorder %s74, %s76
      %p80 = scmp.eq.s32.totalorder %s14, 0
      %p81 = por %p79, %p80
      %p82 = scmp.ne.s32.totalorder %s74, %s76
      %p83 = scmp.eq.s32.totalorder %s19, 1
      %p84 = por %p82, %p83
      %p85 = scmp.ne.s32.totalorder %s76, %s77
      %p86 = scmp.eq.s32.totalorder %s19, 0
      %p87 = por %p85, %p86
      %p88 = scmp.ne.s32.totalorder %s76, %s77
      %p89 = scmp.eq.s32.totalorder %s20, 1
      %p90 = por %p88, %p89
      %p92 = scmp.ne.s32.totalorder %s77, %s91
      %p93 = scmp.eq.s32.totalorder %s20, 0
      %p94 = por %p92, %p93
      %s96 = sadd.s32 %s95, 1
      %p99 = scmp.eq.s32.totalorder %s14, 1
      %p100 = scmp.ne.s32.totalorder %s95, %s97
      %p101 = scmp.eq.s32.totalorder %s14, 0
      %p102 = por %p100, %p101
      %p103 = scmp.ne.s32.totalorder %s95, %s97
      %p104 = scmp.eq.s32.totalorder %s19, 1
      %p105 = por %p103, %p104
      %p106 = scmp.ne.s32.totalorder %s97, %s98
      %p107 = scmp.eq.s32.totalorder %s19, 0
      %p108 = por %p106, %p107
      %p109 = scmp.ne.s32.totalorder %s97, %s98
      %p110 = scmp.eq.s32.totalorder %s20, 1
      %p111 = por %p109, %p110
      %p113 = scmp.ne.s32.totalorder %s98, %s112
      %p114 = scmp.eq.s32.totalorder %s20, 0
      %p115 = por %p113, %p114
      %s117 = sadd.s32 %s116, 1
      %p120 = scmp.eq.s32.totalorder %s14, 1
      %p121 = scmp.ne.s32.totalorder %s116, %s118
      %p122 = scmp.eq.s32.totalorder %s14, 0
      %p123 = por %p121, %p122
      %p124 = scmp.ne.s32.totalorder %s116, %s118
      %p125 = scmp.eq.s32.totalorder %s19, 1
      %p126 = por %p124, %p125
      %p127 = scmp.ne.s32.totalorder %s118, %s119
      %p128 = scmp.eq.s32.totalorder %s19, 0
      %p129 = por %p127, %p128
      %p130 = scmp.ne.s32.totalorder %s118, %s119
      %p131 = scmp.eq.s32.totalorder %s20, 1
      %p132 = por %p130, %p131
      %p134 = scmp.ne.s32.totalorder %s119, %s133
      %p135 = scmp.eq.s32.totalorder %s20, 0
      %p136 = por %p134, %p135
      %s137 = ssub.s32 %s14, %s21
      %p138 = scmp.eq.s32.totalorder %s137, 0
      %s140 = sadd.s32 %s139, 1
      %s141 = scalar_select %p138, %s139, %s140
      %p144 = pneg %p138
      %p145 = scmp.eq.s32.totalorder %s14, 1
      %p146 = por %p144, %p145
      %p147 = scmp.ne.s32.totalorder %s139, %s142
      %p148 = scmp.eq.s32.totalorder %s14, 0
      %p149 = por %p147, %p148
      %p150 = scmp.ne.s32.totalorder %s139, %s142
      %p151 = scmp.eq.s32.totalorder %s19, 1
      %p152 = por %p150, %p151
      %p153 = scmp.ne.s32.totalorder %s142, %s143
      %p154 = scmp.eq.s32.totalorder %s19, 0
      %p155 = por %p153, %p154
      %p156 = scmp.ne.s32.totalorder %s142, %s143
      %p157 = scmp.eq.s32.totalorder %s20, 1
      %p158 = por %p156, %p157
      %p160 = scmp.ne.s32.totalorder %s143, %s159
      %p161 = scmp.eq.s32.totalorder %s20, 0
      %p162 = por %p160, %p161
      %p163 = scmp.le.s32.totalorder 1, %s14
      %p164 = scmp.lt.s32.totalorder %s14, 3
      %p165 = pnand %p163, %p164
      %p166 = pneg %p165
      // Predicated region
      $region9: #{tpu_custom_call.1} parent=5 // pred_check
        _
      $region10: #{tpu_custom_call.1} parent=5 // pred_check_branch
        %168 = sbr.rel (%p165) target = $region12
      $region11: #{tpu_custom_call.1} parent=5 // pred_region
        %s169 = ssub.s32 %s14, 1
        // Predicated region
        $region13: #{tpu_custom_call.1} parent=11 // pred_check
          %p170 = pneg %p87
        $region14: #{tpu_custom_call.1} parent=11 // pred_check_branch
          %172 = sbr.rel (%p170) target = $region16
        $region15: #{tpu_custom_call.1} parent=11 // pred_region
          _
        $region16: #{tpu_custom_call.1} parent=11 // pred_fallthru
          _
        // Predicated region
        $region17: #{tpu_custom_call.1} parent=11 // pred_check
          %p173 = pneg %p108
        $region18: #{tpu_custom_call.1} parent=11 // pred_check_branch
          %175 = sbr.rel (%p173) target = $region20
        $region19: #{tpu_custom_call.1} parent=11 // pred_region
          _
        $region20: #{tpu_custom_call.1} parent=11 // pred_fallthru
          _
        // Predicated region
        $region21: #{tpu_custom_call.1} parent=11 // pred_check
          %p176 = pneg %p129
        $region22: #{tpu_custom_call.1} parent=11 // pred_check_branch
          %178 = sbr.rel (%p176) target = $region24
        $region23: #{tpu_custom_call.1} parent=11 // pred_region
          _
        $region24: #{tpu_custom_call.1} parent=11 // pred_fallthru
          _
      $region12: #{tpu_custom_call.1} parent=5 // pred_fallthru
        _
      %p179 = scmp.lt.s32.totalorder %s14, 2
      // Predicated region
      $region25: #{tpu_custom_call.1} parent=5 // pred_check
        %p180 = pneg %p179
      $region26: #{tpu_custom_call.1} parent=5 // pred_check_branch
        %182 = sbr.rel (%p180) target = $region28
      $region27: #{tpu_custom_call.1} parent=5 // pred_region
        // Predicated region
        $region29: #{tpu_custom_call.1} parent=27 // pred_check
          %p183 = pneg %p34
        $region30: #{tpu_custom_call.1} parent=27 // pred_check_branch
          %185 = sbr.rel (%p183) target = $region32
        $region31: #{tpu_custom_call.1} parent=27 // pred_region
          %p186 = scmp.lt.s32.totalorder %s14, 1
          %s187 = scalar_select %p186, %s14, 1
          %s188 = scalar_lea.vmem %s0, %s187
        $region32: #{tpu_custom_call.1} parent=27 // pred_fallthru
          _
        // Predicated region
        $region33: #{tpu_custom_call.1} parent=27 // pred_check
          %p189 = pneg %p60
        $region34: #{tpu_custom_call.1} parent=27 // pred_check_branch
          %191 = sbr.rel (%p189) target = $region36
        $region35: #{tpu_custom_call.1} parent=27 // pred_region
          %p192 = scmp.lt.s32.totalorder %s14, 1
          %s193 = scalar_select %p192, %s14, 1
          %s194 = scalar_lea.vmem %s1, %s193
        $region36: #{tpu_custom_call.1} parent=27 // pred_fallthru
          _
      $region28: #{tpu_custom_call.1} parent=5 // pred_fallthru
        _
      %p195 = scmp.le.s32.totalorder 1, %s14
      %p196 = scmp.lt.s32.totalorder %s14, 3
      %p197 = pnand %p195, %p196
      %p198 = pneg %p197
      // Predicated region
      $region37: #{tpu_custom_call.1} parent=5 // pred_check
        _
      $region38: #{tpu_custom_call.1} parent=5 // pred_check_branch
        %200 = sbr.rel (%p197) target = $region40
      $region39: #{tpu_custom_call.1} parent=5 // pred_region
        %s201 = ssub.s32 %s14, 1
        %p202 = scmp.lt.s32.totalorder %s19, 1
        %s203 = scalar_select %p202, %s19, 1
        %s204 = scalar_lea.vmem %s0, %s203
        %p205 = pneg %p40
        %p206 = pneg %p37
        %p207 = scmp.lt.s32.totalorder %s19, 1
        %s208 = scalar_select %p207, %s19, 1
        %s209 = scalar_lea.vmem %s1, %s208
        %p210 = pneg %p66
        %p211 = pneg %p63
        %p212 = pneg %p87
        %p213 = pneg %p84
        %p214 = pneg %p108
        %p215 = pneg %p105
        %p216 = pneg %p129
        %p217 = pneg %p126
        %p218 = pneg %p155
        %p219 = pneg %p152
        %s220 = sand.u32 %s142, 1
        %s221 = scalar_lea.sflag [#allocation4], %s220
        %s222 = sand.u32 %s142, 1
        %s223 = smul.addr %s222, 64
        %s224 = scalar_lea.vmem [#allocation3], %s223
        %p225 = scmp.lt.s32.totalorder %s19, 1
        %s226 = scalar_select %p225, %s19, 1
        %s227 = scalar_lea.vmem %s0, %s226
        %p228 = scmp.lt.s32.totalorder %s19, 1
        %s229 = scalar_select %p228, %s19, 1
        %s230 = scalar_lea.vmem %s1, %s229
        %v231 = vld [vmem:[%s2] sm:$0xff]
        %v232 = vld [vmem:[%s2 + $0x8] sm:$0xff]
        %v233 = vld [vmem:[%s227] sm:$0x1]
        %235 = vset.pattern.permute.xlu0 0
        %236 = vperm.xlu0 %235, %v231
        %v237 = vpop.permute.xlu0 %236
        %240 = vset.pattern.permute.xlu0 0
        %241 = vperm.xlu0 %240, %v232
        %v242 = vpop.permute.xlu0 %241
        %v245 = vlaneseq
        %v246 = vshrl.u32 %v245, 7
        %v247 = vsub.s32 0, %v246
        %v248 = vrot.slane %v233, %v247
        %v250 = vmul.f32 %v237, %v248
        %v251 = vmul.f32 %v242, %v248
        %v252 = vld [vmem:[%s230] sm:$0x1]
        %v254 = vlaneseq
        %v255 = vshrl.u32 %v254, 7
        %v256 = vsub.s32 0, %v255
        %v257 = vrot.slane %v252, %v256
        %v259 = vmul.f32 %v237, %v257
        %v260 = vmul.f32 %v242, %v257
        %v261 = vand.u32 2147483647, %v250
        %vm262 = vcmp.le.f32.partialorder %v261, 0.7853982
        %vm263 = vcmp.lt.s32.totalorder %v250, 0
        %v264 = vand.u32 %v250, 2139095040
        %v265 = vshrl.u32 %v264, 23
        %v266 = vsub.s32 %v265, 127
        %v267 = vand.u32 2147483647, %v250
        %v268 = vand.u32 %v267, 8388607
        %v269 = vor.u32 %v268, 8388608
        %v270 = vsub.s32 0, %v269
        %v271 = vadd.s32 %v266, 1
        %vm272 = vcmp.gt.s32.totalorder %v271, 0
        %v273 = vsel %vm272, %v271, 0
        %v274 = vshrl.u32 %v273, 5
        %v275 = vand.u32 %v273, 31
        %v276 = vsub.s32 32, %v275
        %v277 = vshrl.u32 683565275, %v276
        %v278 = vshll.u32 683565275, %v275
        %v279 = vshrl.u32 2475754826, %v276
        %v280 = vor.u32 %v278, %v279
        %v281 = vshll.u32 2475754826, %v275
        %v282 = vshrl.u32 2131351028, %v276
        %v283 = vor.u32 %v281, %v282
        %v284 = vshll.u32 2131351028, %v275
        %v285 = vshrl.u32 2102212464, %v276
        %v286 = vor.u32 %v284, %v285
        %v287 = vshll.u32 2102212464, %v275
        %v288 = vshrl.u32 920167782, %v276
        %v289 = vor.u32 %v287, %v288
        %v290 = vshll.u32 920167782, %v275
        %v291 = vshrl.u32 1326507024, %v276
        %v292 = vor.u32 %v290, %v291
        %vm293 = vcmp.lt.s32.totalorder %v274, 1
        %vm294 = vcmp.lt.s32.totalorder %v274, 2
        %vm295 = vcmp.lt.s32.totalorder %v274, 3
        %vm296 = vcmp.lt.s32.totalorder %v274, 4
        %v297 = vsel %vm293, %v277, %v280
        %v298 = vsel %vm296, %v286, 2102212464
        %v299 = vsel %vm295, %v283, %v298
        %v300 = vsel %vm294, %v297, %v299
        %v301 = vsel %vm293, %v280, %v283
        %v302 = vsel %vm296, %v289, 920167782
        %v303 = vsel %vm295, %v286, %v302
        %v304 = vsel %vm294, %v301, %v303
        %v305 = vsel %vm293, %v283, %v286
        %v306 = vsel %vm296, %v292, 1326507024
        %v307 = vsel %vm295, %v289, %v306
        %v308 = vsel %vm294, %v305, %v307
        %v309 = vshll.u32 %v269, 8
        %v310 = vmul.u32.u64.compose %v309, %v308
        %v311 = vextract.low.u32 %v310
        %v312 = vextract.high.u32 %v310
        %v313 = vmul.u32.u64.compose %v309, %v304
        %v314 = vextract.low.u32 %v313
        %v315 = vextract.high.u32 %v313
        %v316 = vmul.u32 %v309, %v300
        %v317 = vadd.s32 %v312, %v314
        %vm318 = vc.u32 %v312, %v314
        %v319 = vadd.s32 %v315, 1
        %v320 = vsel %vm318, %v319, %v315
        %v321 = vadd.s32 %v316, %v320
        %v322 = vadd.s32 %v321, 536870912
        %v323 = vshrl.u32 %v322, 30
        %v324 = vshll.u32 %v323, 30
        %v325 = vsub.s32 %v321, %v324
        %vm326 = vcmp.lt.s32.totalorder %v325, 0
        %v327 = vsub.s32 0, %v325
        %v328 = vsel %vm326, %v327, %v325
        %v329 = vclz %v328
        %v330 = vsub.s32 %v329, 2
        %vm331 = vcmp.gt.s32.totalorder 0, %v330
        %v332 = vsel %vm331, 0, %v330
        %v333 = vsub.s32 32, %v332
        %v334 = vshll.u32 %v325, %v332
        %v335 = vshrl.u32 %v317, %v333
        %v336 = vor.u32 %v334, %v335
        %v337 = vsub.s32 4294967266, %v332
        %v338 = vadd.s32 %v337, 127
        %v339 = vshll.u32 %v338, 23
        %v340 = vor.u32 4788187, %v339
        %v341 = vand.u32 2147483647, %v340
        %v343 = vcvt.s32.f32 %v336
        %v344 = vmul.f32 %v343, %v341
        %v345 = vxor.u32 %v344, 2147483648
        %v346 = vsel %vm263, %v345, %v344
        %v347 = vsub.s32 4, %v323
        %v348 = vsel %vm263, %v347, %v323
        %v349 = vsel %vm262, %v250, %v346
        %v350 = vsel %vm262, 0, %v348
        %v351 = vcosq.f32.pop %v349
        %v352 = vsinq.f32.pop %v349
        %vm353 = vweird.f32 %v250
        %v354 = vadd.s32 %v350, 3
        %v355 = vand.u32 %v354, 3
        %vm356 = vcmp.lt.s32.totalorder %v355, 2
        %vm357 = vcmp.eq.s32.totalorder %v355, 0
        %v358 = vxor.u32 %v352, 2147483648
        %v359 = vsel %vm357, %v351, %v358
        %vm360 = vcmp.eq.s32.totalorder %v355, 2
        %v361 = vxor.u32 %v351, 2147483648
        %v362 = vsel %vm360, %v361, %v352
        %v363 = vsel %vm356, %v359, %v362
        %v364 = vsel %vm353, nan, %v363
        %v365 = vand.u32 2147483647, %v251
        %vm366 = vcmp.le.f32.partialorder %v365, 0.7853982
        %vm367 = vcmp.lt.s32.totalorder %v251, 0
        %v368 = vand.u32 %v251, 2139095040
        %v369 = vshrl.u32 %v368, 23
        %v370 = vsub.s32 %v369, 127
        %v371 = vand.u32 2147483647, %v251
        %v372 = vand.u32 %v371, 8388607
        %v373 = vor.u32 %v372, 8388608
        %v374 = vsub.s32 0, %v373
        %v375 = vadd.s32 %v370, 1
        %vm376 = vcmp.gt.s32.totalorder %v375, 0
        %v377 = vsel %vm376, %v375, 0
        %v378 = vshrl.u32 %v377, 5
        %v379 = vand.u32 %v377, 31
        %v380 = vsub.s32 32, %v379
        %v381 = vshrl.u32 683565275, %v380
        %v382 = vshll.u32 683565275, %v379
        %v383 = vshrl.u32 2475754826, %v380
        %v384 = vor.u32 %v382, %v383
        %v385 = vshll.u32 2475754826, %v379
        %v386 = vshrl.u32 2131351028, %v380
        %v387 = vor.u32 %v385, %v386
        %v388 = vshll.u32 2131351028, %v379
        %v389 = vshrl.u32 2102212464, %v380
        %v390 = vor.u32 %v388, %v389
        %v391 = vshll.u32 2102212464, %v379
        %v392 = vshrl.u32 920167782, %v380
        %v393 = vor.u32 %v391, %v392
        %v394 = vshll.u32 920167782, %v379
        %v395 = vshrl.u32 1326507024, %v380
        %v396 = vor.u32 %v394, %v395
        %vm397 = vcmp.lt.s32.totalorder %v378, 1
        %vm398 = vcmp.lt.s32.totalorder %v378, 2
        %vm399 = vcmp.lt.s32.totalorder %v378, 3
        %vm400 = vcmp.lt.s32.totalorder %v378, 4
        %v401 = vsel %vm397, %v381, %v384
        %v402 = vsel %vm400, %v390, 2102212464
        %v403 = vsel %vm399, %v387, %v402
        %v404 = vsel %vm398, %v401, %v403
        %v405 = vsel %vm397, %v384, %v387
        %v406 = vsel %vm400, %v393, 920167782
        %v407 = vsel %vm399, %v390, %v406
        %v408 = vsel %vm398, %v405, %v407
        %v409 = vsel %vm397, %v387, %v390
        %v410 = vsel %vm400, %v396, 1326507024
        %v411 = vsel %vm399, %v393, %v410
        %v412 = vsel %vm398, %v409, %v411
        %v413 = vshll.u32 %v373, 8
        %v414 = vmul.u32.u64.compose %v413, %v412
        %v415 = vextract.low.u32 %v414
        %v416 = vextract.high.u32 %v414
        %v417 = vmul.u32.u64.compose %v413, %v408
        %v418 = vextract.low.u32 %v417
        %v419 = vextract.high.u32 %v417
        %v420 = vmul.u32 %v413, %v404
        %v421 = vadd.s32 %v416, %v418
        %vm422 = vc.u32 %v416, %v418
        %v423 = vadd.s32 %v419, 1
        %v424 = vsel %vm422, %v423, %v419
        %v425 = vadd.s32 %v420, %v424
        %v426 = vadd.s32 %v425, 536870912
        %v427 = vshrl.u32 %v426, 30
        %v428 = vshll.u32 %v427, 30
        %v429 = vsub.s32 %v425, %v428
        %vm430 = vcmp.lt.s32.totalorder %v429, 0
        %v431 = vsub.s32 0, %v429
        %v432 = vsel %vm430, %v431, %v429
        %v433 = vclz %v432
        %v434 = vsub.s32 %v433, 2
        %vm435 = vcmp.gt.s32.totalorder 0, %v434
        %v436 = vsel %vm435, 0, %v434
        %v437 = vsub.s32 32, %v436
        %v438 = vshll.u32 %v429, %v436
        %v439 = vshrl.u32 %v421, %v437
        %v440 = vor.u32 %v438, %v439
        %v441 = vsub.s32 4294967266, %v436
        %v442 = vadd.s32 %v441, 127
        %v443 = vshll.u32 %v442, 23
        %v444 = vor.u32 4788187, %v443
        %v445 = vand.u32 2147483647, %v444
        %v447 = vcvt.s32.f32 %v440
        %v448 = vmul.f32 %v447, %v445
        %v449 = vxor.u32 %v448, 2147483648
        %v450 = vsel %vm367, %v449, %v448
        %v451 = vsub.s32 4, %v427
        %v452 = vsel %vm367, %v451, %v427
        %v453 = vsel %vm366, %v251, %v450
        %v454 = vsel %vm366, 0, %v452
        %v455 = vcosq.f32.pop %v453
        %v456 = vsinq.f32.pop %v453
        %vm457 = vweird.f32 %v251
        %v458 = vadd.s32 %v454, 3
        %v459 = vand.u32 %v458, 3
        %vm460 = vcmp.lt.s32.totalorder %v459, 2
        %vm461 = vcmp.eq.s32.totalorder %v459, 0
        %v462 = vxor.u32 %v456, 2147483648
        %v463 = vsel %vm461, %v455, %v462
        %vm464 = vcmp.eq.s32.totalorder %v459, 2
        %v465 = vxor.u32 %v455, 2147483648
        %v466 = vsel %vm464, %v465, %v456
        %v467 = vsel %vm460, %v463, %v466
        %v468 = vsel %vm457, nan, %v467
        %469 = vst [vmem:[#allocation2] sm:$0xff] %v364
        %470 = vst [vmem:[#allocation2 + $0x8] sm:$0xff] %v468
        %v471 = vand.u32 2147483647, %v250
        %vm472 = vcmp.le.f32.partialorder %v471, 0.7853982
        %vm473 = vcmp.lt.s32.totalorder %v250, 0
        %v474 = vand.u32 %v250, 2139095040
        %v475 = vshrl.u32 %v474, 23
        %v476 = vsub.s32 %v475, 127
        %v477 = vand.u32 2147483647, %v250
        %v478 = vand.u32 %v477, 8388607
        %v479 = vor.u32 %v478, 8388608
        %v480 = vsub.s32 0, %v479
        %v481 = vadd.s32 %v476, 1
        %vm482 = vcmp.gt.s32.totalorder %v481, 0
        %v483 = vsel %vm482, %v481, 0
        %v484 = vshrl.u32 %v483, 5
        %v485 = vand.u32 %v483, 31
        %v486 = vsub.s32 32, %v485
        %v487 = vshrl.u32 683565275, %v486
        %v488 = vshll.u32 683565275, %v485
        %v489 = vshrl.u32 2475754826, %v486
        %v490 = vor.u32 %v488, %v489
        %v491 = vshll.u32 2475754826, %v485
        %v492 = vshrl.u32 2131351028, %v486
        %v493 = vor.u32 %v491, %v492
        %v494 = vshll.u32 2131351028, %v485
        %v495 = vshrl.u32 2102212464, %v486
        %v496 = vor.u32 %v494, %v495
        %v497 = vshll.u32 2102212464, %v485
        %v498 = vshrl.u32 920167782, %v486
        %v499 = vor.u32 %v497, %v498
        %v500 = vshll.u32 920167782, %v485
        %v501 = vshrl.u32 1326507024, %v486
        %v502 = vor.u32 %v500, %v501
        %vm503 = vcmp.lt.s32.totalorder %v484, 1
        %vm504 = vcmp.lt.s32.totalorder %v484, 2
        %vm505 = vcmp.lt.s32.totalorder %v484, 3
        %vm506 = vcmp.lt.s32.totalorder %v484, 4
        %v507 = vsel %vm503, %v487, %v490
        %v508 = vsel %vm506, %v496, 2102212464
        %v509 = vsel %vm505, %v493, %v508
        %v510 = vsel %vm504, %v507, %v509
        %v511 = vsel %vm503, %v490, %v493
        %v512 = vsel %vm506, %v499, 920167782
        %v513 = vsel %vm505, %v496, %v512
        %v514 = vsel %vm504, %v511, %v513
        %v515 = vsel %vm503, %v493, %v496
        %v516 = vsel %vm506, %v502, 1326507024
        %v517 = vsel %vm505, %v499, %v516
        %v518 = vsel %vm504, %v515, %v517
        %v519 = vshll.u32 %v479, 8
        %v520 = vmul.u32.u64.compose %v519, %v518
        %v521 = vextract.low.u32 %v520
        %v522 = vextract.high.u32 %v520
        %v523 = vmul.u32.u64.compose %v519, %v514
        %v524 = vextract.low.u32 %v523
        %v525 = vextract.high.u32 %v523
        %v526 = vmul.u32 %v519, %v510
        %v527 = vadd.s32 %v522, %v524
        %vm528 = vc.u32 %v522, %v524
        %v529 = vadd.s32 %v525, 1
        %v530 = vsel %vm528, %v529, %v525
        %v531 = vadd.s32 %v526, %v530
        %v532 = vadd.s32 %v531, 536870912
        %v533 = vshrl.u32 %v532, 30
        %v534 = vshll.u32 %v533, 30
        %v535 = vsub.s32 %v531, %v534
        %vm536 = vcmp.lt.s32.totalorder %v535, 0
        %v537 = vsub.s32 0, %v535
        %v538 = vsel %vm536, %v537, %v535
        %v539 = vclz %v538
        %v540 = vsub.s32 %v539, 2
        %vm541 = vcmp.gt.s32.totalorder 0, %v540
        %v542 = vsel %vm541, 0, %v540
        %v543 = vsub.s32 32, %v542
        %v544 = vshll.u32 %v535, %v542
        %v545 = vshrl.u32 %v527, %v543
        %v546 = vor.u32 %v544, %v545
        %v547 = vsub.s32 4294967266, %v542
        %v548 = vadd.s32 %v547, 127
        %v549 = vshll.u32 %v548, 23
        %v550 = vor.u32 4788187, %v549
        %v551 = vand.u32 2147483647, %v550
        %v553 = vcvt.s32.f32 %v546
        %v554 = vmul.f32 %v553, %v551
        %v555 = vxor.u32 %v554, 2147483648
        %v556 = vsel %vm473, %v555, %v554
        %v557 = vsub.s32 4, %v533
        %v558 = vsel %vm473, %v557, %v533
        %v559 = vsel %vm472, %v250, %v556
        %v560 = vsel %vm472, 0, %v558
        %v561 = vcosq.f32.pop %v559
        %v562 = vsinq.f32.pop %v559
        %vm563 = vweird.f32 %v250
        %v564 = vand.u32 %v560, 3
        %vm565 = vcmp.lt.s32.totalorder %v564, 2
        %vm566 = vcmp.eq.s32.totalorder %v564, 0
        %v567 = vxor.u32 %v562, 2147483648
        %v568 = vsel %vm566, %v561, %v567
        %vm569 = vcmp.eq.s32.totalorder %v564, 2
        %v570 = vxor.u32 %v561, 2147483648
        %v571 = vsel %vm569, %v570, %v562
        %v572 = vsel %vm565, %v568, %v571
        %v573 = vsel %vm563, nan, %v572
        %v574 = vand.u32 2147483647, %v251
        %vm575 = vcmp.le.f32.partialorder %v574, 0.7853982
        %vm576 = vcmp.lt.s32.totalorder %v251, 0
        %v577 = vand.u32 %v251, 2139095040
        %v578 = vshrl.u32 %v577, 23
        %v579 = vsub.s32 %v578, 127
        %v580 = vand.u32 2147483647, %v251
        %v581 = vand.u32 %v580, 8388607
        %v582 = vor.u32 %v581, 8388608
        %v583 = vsub.s32 0, %v582
        %v584 = vadd.s32 %v579, 1
        %vm585 = vcmp.gt.s32.totalorder %v584, 0
        %v586 = vsel %vm585, %v584, 0
        %v587 = vshrl.u32 %v586, 5
        %v588 = vand.u32 %v586, 31
        %v589 = vsub.s32 32, %v588
        %v590 = vshrl.u32 683565275, %v589
        %v591 = vshll.u32 683565275, %v588
        %v592 = vshrl.u32 2475754826, %v589
        %v593 = vor.u32 %v591, %v592
        %v594 = vshll.u32 2475754826, %v588
        %v595 = vshrl.u32 2131351028, %v589
        %v596 = vor.u32 %v594, %v595
        %v597 = vshll.u32 2131351028, %v588
        %v598 = vshrl.u32 2102212464, %v589
        %v599 = vor.u32 %v597, %v598
        %v600 = vshll.u32 2102212464, %v588
        %v601 = vshrl.u32 920167782, %v589
        %v602 = vor.u32 %v600, %v601
        %v603 = vshll.u32 920167782, %v588
        %v604 = vshrl.u32 1326507024, %v589
        %v605 = vor.u32 %v603, %v604
        %vm606 = vcmp.lt.s32.totalorder %v587, 1
        %vm607 = vcmp.lt.s32.totalorder %v587, 2
        %vm608 = vcmp.lt.s32.totalorder %v587, 3
        %vm609 = vcmp.lt.s32.totalorder %v587, 4
        %v610 = vsel %vm606, %v590, %v593
        %v611 = vsel %vm609, %v599, 2102212464
        %v612 = vsel %vm608, %v596, %v611
        %v613 = vsel %vm607, %v610, %v612
        %v614 = vsel %vm606, %v593, %v596
        %v615 = vsel %vm609, %v602, 920167782
        %v616 = vsel %vm608, %v599, %v615
        %v617 = vsel %vm607, %v614, %v616
        %v618 = vsel %vm606, %v596, %v599
        %v619 = vsel %vm609, %v605, 1326507024
        %v620 = vsel %vm608, %v602, %v619
        %v621 = vsel %vm607, %v618, %v620
        %v622 = vshll.u32 %v582, 8
        %v623 = vmul.u32.u64.compose %v622, %v621
        %v624 = vextract.low.u32 %v623
        %v625 = vextract.high.u32 %v623
        %v626 = vmul.u32.u64.compose %v622, %v617
        %v627 = vextract.low.u32 %v626
        %v628 = vextract.high.u32 %v626
        %v629 = vmul.u32 %v622, %v613
        %v630 = vadd.s32 %v625, %v627
        %vm631 = vc.u32 %v625, %v627
        %v632 = vadd.s32 %v628, 1
        %v633 = vsel %vm631, %v632, %v628
        %v634 = vadd.s32 %v629, %v633
        %v635 = vadd.s32 %v634, 536870912
        %v636 = vshrl.u32 %v635, 30
        %v637 = vshll.u32 %v636, 30
        %v638 = vsub.s32 %v634, %v637
        %vm639 = vcmp.lt.s32.totalorder %v638, 0
        %v640 = vsub.s32 0, %v638
        %v641 = vsel %vm639, %v640, %v638
        %v642 = vclz %v641
        %v643 = vsub.s32 %v642, 2
        %vm644 = vcmp.gt.s32.totalorder 0, %v643
        %v645 = vsel %vm644, 0, %v643
        %v646 = vsub.s32 32, %v645
        %v647 = vshll.u32 %v638, %v645
        %v648 = vshrl.u32 %v630, %v646
        %v649 = vor.u32 %v647, %v648
        %v650 = vsub.s32 4294967266, %v645
        %v651 = vadd.s32 %v650, 127
        %v652 = vshll.u32 %v651, 23
        %v653 = vor.u32 4788187, %v652
        %v654 = vand.u32 2147483647, %v653
        %v656 = vcvt.s32.f32 %v649
        %v657 = vmul.f32 %v656, %v654
        %v658 = vxor.u32 %v657, 2147483648
        %v659 = vsel %vm576, %v658, %v657
        %v660 = vsub.s32 4, %v636
        %v661 = vsel %vm576, %v660, %v636
        %v662 = vsel %vm575, %v251, %v659
        %v663 = vsel %vm575, 0, %v661
        %v664 = vcosq.f32.pop %v662
        %v665 = vsinq.f32.pop %v662
        %vm666 = vweird.f32 %v251
        %v667 = vand.u32 %v663, 3
        %vm668 = vcmp.lt.s32.totalorder %v667, 2
        %vm669 = vcmp.eq.s32.totalorder %v667, 0
        %v670 = vxor.u32 %v665, 2147483648
        %v671 = vsel %vm669, %v664, %v670
        %vm672 = vcmp.eq.s32.totalorder %v667, 2
        %v673 = vxor.u32 %v664, 2147483648
        %v674 = vsel %vm672, %v673, %v665
        %v675 = vsel %vm668, %v671, %v674
        %v676 = vsel %vm666, nan, %v675
        %677 = vst [vmem:[#allocation2 + $0x10] sm:$0xff] %v573
        %678 = vst [vmem:[#allocation2 + $0x18] sm:$0xff] %v676
        %v679 = vand.u32 2147483647, %v259
        %vm680 = vcmp.le.f32.partialorder %v679, 0.7853982
        %vm681 = vcmp.lt.s32.totalorder %v259, 0
        %v682 = vand.u32 %v259, 2139095040
        %v683 = vshrl.u32 %v682, 23
        %v684 = vsub.s32 %v683, 127
        %v685 = vand.u32 2147483647, %v259
        %v686 = vand.u32 %v685, 8388607
        %v687 = vor.u32 %v686, 8388608
        %v688 = vsub.s32 0, %v687
        %v689 = vadd.s32 %v684, 1
        %vm690 = vcmp.gt.s32.totalorder %v689, 0
        %v691 = vsel %vm690, %v689, 0
        %v692 = vshrl.u32 %v691, 5
        %v693 = vand.u32 %v691, 31
        %v694 = vsub.s32 32, %v693
        %v695 = vshrl.u32 683565275, %v694
        %v696 = vshll.u32 683565275, %v693
        %v697 = vshrl.u32 2475754826, %v694
        %v698 = vor.u32 %v696, %v697
        %v699 = vshll.u32 2475754826, %v693
        %v700 = vshrl.u32 2131351028, %v694
        %v701 = vor.u32 %v699, %v700
        %v702 = vshll.u32 2131351028, %v693
        %v703 = vshrl.u32 2102212464, %v694
        %v704 = vor.u32 %v702, %v703
        %v705 = vshll.u32 2102212464, %v693
        %v706 = vshrl.u32 920167782, %v694
        %v707 = vor.u32 %v705, %v706
        %v708 = vshll.u32 920167782, %v693
        %v709 = vshrl.u32 1326507024, %v694
        %v710 = vor.u32 %v708, %v709
        %vm711 = vcmp.lt.s32.totalorder %v692, 1
        %vm712 = vcmp.lt.s32.totalorder %v692, 2
        %vm713 = vcmp.lt.s32.totalorder %v692, 3
        %vm714 = vcmp.lt.s32.totalorder %v692, 4
        %v715 = vsel %vm711, %v695, %v698
        %v716 = vsel %vm714, %v704, 2102212464
        %v717 = vsel %vm713, %v701, %v716
        %v718 = vsel %vm712, %v715, %v717
        %v719 = vsel %vm711, %v698, %v701
        %v720 = vsel %vm714, %v707, 920167782
        %v721 = vsel %vm713, %v704, %v720
        %v722 = vsel %vm712, %v719, %v721
        %v723 = vsel %vm711, %v701, %v704
        %v724 = vsel %vm714, %v710, 1326507024
        %v725 = vsel %vm713, %v707, %v724
        %v726 = vsel %vm712, %v723, %v725
        %v727 = vshll.u32 %v687, 8
        %v728 = vmul.u32.u64.compose %v727, %v726
        %v729 = vextract.low.u32 %v728
        %v730 = vextract.high.u32 %v728
        %v731 = vmul.u32.u64.compose %v727, %v722
        %v732 = vextract.low.u32 %v731
        %v733 = vextract.high.u32 %v731
        %v734 = vmul.u32 %v727, %v718
        %v735 = vadd.s32 %v730, %v732
        %vm736 = vc.u32 %v730, %v732
        %v737 = vadd.s32 %v733, 1
        %v738 = vsel %vm736, %v737, %v733
        %v739 = vadd.s32 %v734, %v738
        %v740 = vadd.s32 %v739, 536870912
        %v741 = vshrl.u32 %v740, 30
        %v742 = vshll.u32 %v741, 30
        %v743 = vsub.s32 %v739, %v742
        %vm744 = vcmp.lt.s32.totalorder %v743, 0
        %v745 = vsub.s32 0, %v743
        %v746 = vsel %vm744, %v745, %v743
        %v747 = vclz %v746
        %v748 = vsub.s32 %v747, 2
        %vm749 = vcmp.gt.s32.totalorder 0, %v748
        %v750 = vsel %vm749, 0, %v748
        %v751 = vsub.s32 32, %v750
        %v752 = vshll.u32 %v743, %v750
        %v753 = vshrl.u32 %v735, %v751
        %v754 = vor.u32 %v752, %v753
        %v755 = vsub.s32 4294967266, %v750
        %v756 = vadd.s32 %v755, 127
        %v757 = vshll.u32 %v756, 23
        %v758 = vor.u32 4788187, %v757
        %v759 = vand.u32 2147483647, %v758
        %v761 = vcvt.s32.f32 %v754
        %v762 = vmul.f32 %v761, %v759
        %v763 = vxor.u32 %v762, 2147483648
        %v764 = vsel %vm681, %v763, %v762
        %v765 = vsub.s32 4, %v741
        %v766 = vsel %vm681, %v765, %v741
        %v767 = vsel %vm680, %v259, %v764
        %v768 = vsel %vm680, 0, %v766
        %v769 = vcosq.f32.pop %v767
        %v770 = vsinq.f32.pop %v767
        %vm771 = vweird.f32 %v259
        %v772 = vadd.s32 %v768, 3
        %v773 = vand.u32 %v772, 3
        %vm774 = vcmp.lt.s32.totalorder %v773, 2
        %vm775 = vcmp.eq.s32.totalorder %v773, 0
        %v776 = vxor.u32 %v770, 2147483648
        %v777 = vsel %vm775, %v769, %v776
        %vm778 = vcmp.eq.s32.totalorder %v773, 2
        %v779 = vxor.u32 %v769, 2147483648
        %v780 = vsel %vm778, %v779, %v770
        %v781 = vsel %vm774, %v777, %v780
        %v782 = vsel %vm771, nan, %v781
        %v783 = vand.u32 2147483647, %v260
        %vm784 = vcmp.le.f32.partialorder %v783, 0.7853982
        %vm785 = vcmp.lt.s32.totalorder %v260, 0
        %v786 = vand.u32 %v260, 2139095040
        %v787 = vshrl.u32 %v786, 23
        %v788 = vsub.s32 %v787, 127
        %v789 = vand.u32 2147483647, %v260
        %v790 = vand.u32 %v789, 8388607
        %v791 = vor.u32 %v790, 8388608
        %v792 = vsub.s32 0, %v791
        %v793 = vadd.s32 %v788, 1
        %vm794 = vcmp.gt.s32.totalorder %v793, 0
        %v795 = vsel %vm794, %v793, 0
        %v796 = vshrl.u32 %v795, 5
        %v797 = vand.u32 %v795, 31
        %v798 = vsub.s32 32, %v797
        %v799 = vshrl.u32 683565275, %v798
        %v800 = vshll.u32 683565275, %v797
        %v801 = vshrl.u32 2475754826, %v798
        %v802 = vor.u32 %v800, %v801
        %v803 = vshll.u32 2475754826, %v797
        %v804 = vshrl.u32 2131351028, %v798
        %v805 = vor.u32 %v803, %v804
        %v806 = vshll.u32 2131351028, %v797
        %v807 = vshrl.u32 2102212464, %v798
        %v808 = vor.u32 %v806, %v807
        %v809 = vshll.u32 2102212464, %v797
        %v810 = vshrl.u32 920167782, %v798
        %v811 = vor.u32 %v809, %v810
        %v812 = vshll.u32 920167782, %v797
        %v813 = vshrl.u32 1326507024, %v798
        %v814 = vor.u32 %v812, %v813
        %vm815 = vcmp.lt.s32.totalorder %v796, 1
        %vm816 = vcmp.lt.s32.totalorder %v796, 2
        %vm817 = vcmp.lt.s32.totalorder %v796, 3
        %vm818 = vcmp.lt.s32.totalorder %v796, 4
        %v819 = vsel %vm815, %v799, %v802
        %v820 = vsel %vm818, %v808, 2102212464
        %v821 = vsel %vm817, %v805, %v820
        %v822 = vsel %vm816, %v819, %v821
        %v823 = vsel %vm815, %v802, %v805
        %v824 = vsel %vm818, %v811, 920167782
        %v825 = vsel %vm817, %v808, %v824
        %v826 = vsel %vm816, %v823, %v825
        %v827 = vsel %vm815, %v805, %v808
        %v828 = vsel %vm818, %v814, 1326507024
        %v829 = vsel %vm817, %v811, %v828
        %v830 = vsel %vm816, %v827, %v829
        %v831 = vshll.u32 %v791, 8
        %v832 = vmul.u32.u64.compose %v831, %v830
        %v833 = vextract.low.u32 %v832
        %v834 = vextract.high.u32 %v832
        %v835 = vmul.u32.u64.compose %v831, %v826
        %v836 = vextract.low.u32 %v835
        %v837 = vextract.high.u32 %v835
        %v838 = vmul.u32 %v831, %v822
        %v839 = vadd.s32 %v834, %v836
        %vm840 = vc.u32 %v834, %v836
        %v841 = vadd.s32 %v837, 1
        %v842 = vsel %vm840, %v841, %v837
        %v843 = vadd.s32 %v838, %v842
        %v844 = vadd.s32 %v843, 536870912
        %v845 = vshrl.u32 %v844, 30
        %v846 = vshll.u32 %v845, 30
        %v847 = vsub.s32 %v843, %v846
        %vm848 = vcmp.lt.s32.totalorder %v847, 0
        %v849 = vsub.s32 0, %v847
        %v850 = vsel %vm848, %v849, %v847
        %v851 = vclz %v850
        %v852 = vsub.s32 %v851, 2
        %vm853 = vcmp.gt.s32.totalorder 0, %v852
        %v854 = vsel %vm853, 0, %v852
        %v855 = vsub.s32 32, %v854
        %v856 = vshll.u32 %v847, %v854
        %v857 = vshrl.u32 %v839, %v855
        %v858 = vor.u32 %v856, %v857
        %v859 = vsub.s32 4294967266, %v854
        %v860 = vadd.s32 %v859, 127
        %v861 = vshll.u32 %v860, 23
        %v862 = vor.u32 4788187, %v861
        %v863 = vand.u32 2147483647, %v862
        %v865 = vcvt.s32.f32 %v858
        %v866 = vmul.f32 %v865, %v863
        %v867 = vxor.u32 %v866, 2147483648
        %v868 = vsel %vm785, %v867, %v866
        %v869 = vsub.s32 4, %v845
        %v870 = vsel %vm785, %v869, %v845
        %v871 = vsel %vm784, %v260, %v868
        %v872 = vsel %vm784, 0, %v870
        %v873 = vcosq.f32.pop %v871
        %v874 = vsinq.f32.pop %v871
        %vm875 = vweird.f32 %v260
        %v876 = vadd.s32 %v872, 3
        %v877 = vand.u32 %v876, 3
        %vm878 = vcmp.lt.s32.totalorder %v877, 2
        %vm879 = vcmp.eq.s32.totalorder %v877, 0
        %v880 = vxor.u32 %v874, 2147483648
        %v881 = vsel %vm879, %v873, %v880
        %vm882 = vcmp.eq.s32.totalorder %v877, 2
        %v883 = vxor.u32 %v873, 2147483648
        %v884 = vsel %vm882, %v883, %v874
        %v885 = vsel %vm878, %v881, %v884
        %v886 = vsel %vm875, nan, %v885
        %887 = vst [vmem:[#allocation2 + $0x20] sm:$0xff] %v782
        %888 = vst [vmem:[#allocation2 + $0x28] sm:$0xff] %v886
        %v889 = vand.u32 2147483647, %v259
        %vm890 = vcmp.le.f32.partialorder %v889, 0.7853982
        %vm891 = vcmp.lt.s32.totalorder %v259, 0
        %v892 = vand.u32 %v259, 2139095040
        %v893 = vshrl.u32 %v892, 23
        %v894 = vsub.s32 %v893, 127
        %v895 = vand.u32 2147483647, %v259
        %v896 = vand.u32 %v895, 8388607
        %v897 = vor.u32 %v896, 8388608
        %v898 = vsub.s32 0, %v897
        %v899 = vadd.s32 %v894, 1
        %vm900 = vcmp.gt.s32.totalorder %v899, 0
        %v901 = vsel %vm900, %v899, 0
        %v902 = vshrl.u32 %v901, 5
        %v903 = vand.u32 %v901, 31
        %v904 = vsub.s32 32, %v903
        %v905 = vshrl.u32 683565275, %v904
        %v906 = vshll.u32 683565275, %v903
        %v907 = vshrl.u32 2475754826, %v904
        %v908 = vor.u32 %v906, %v907
        %v909 = vshll.u32 2475754826, %v903
        %v910 = vshrl.u32 2131351028, %v904
        %v911 = vor.u32 %v909, %v910
        %v912 = vshll.u32 2131351028, %v903
        %v913 = vshrl.u32 2102212464, %v904
        %v914 = vor.u32 %v912, %v913
        %v915 = vshll.u32 2102212464, %v903
        %v916 = vshrl.u32 920167782, %v904
        %v917 = vor.u32 %v915, %v916
        %v918 = vshll.u32 920167782, %v903
        %v919 = vshrl.u32 1326507024, %v904
        %v920 = vor.u32 %v918, %v919
        %vm921 = vcmp.lt.s32.totalorder %v902, 1
        %vm922 = vcmp.lt.s32.totalorder %v902, 2
        %vm923 = vcmp.lt.s32.totalorder %v902, 3
        %vm924 = vcmp.lt.s32.totalorder %v902, 4
        %v925 = vsel %vm921, %v905, %v908
        %v926 = vsel %vm924, %v914, 2102212464
        %v927 = vsel %vm923, %v911, %v926
        %v928 = vsel %vm922, %v925, %v927
        %v929 = vsel %vm921, %v908, %v911
        %v930 = vsel %vm924, %v917, 920167782
        %v931 = vsel %vm923, %v914, %v930
        %v932 = vsel %vm922, %v929, %v931
        %v933 = vsel %vm921, %v911, %v914
        %v934 = vsel %vm924, %v920, 1326507024
        %v935 = vsel %vm923, %v917, %v934
        %v936 = vsel %vm922, %v933, %v935
        %v937 = vshll.u32 %v897, 8
        %v938 = vmul.u32.u64.compose %v937, %v936
        %v939 = vextract.low.u32 %v938
        %v940 = vextract.high.u32 %v938
        %v941 = vmul.u32.u64.compose %v937, %v932
        %v942 = vextract.low.u32 %v941
        %v943 = vextract.high.u32 %v941
        %v944 = vmul.u32 %v937, %v928
        %v945 = vadd.s32 %v940, %v942
        %vm946 = vc.u32 %v940, %v942
        %v947 = vadd.s32 %v943, 1
        %v948 = vsel %vm946, %v947, %v943
        %v949 = vadd.s32 %v944, %v948
        %v950 = vadd.s32 %v949, 536870912
        %v951 = vshrl.u32 %v950, 30
        %v952 = vshll.u32 %v951, 30
        %v953 = vsub.s32 %v949, %v952
        %vm954 = vcmp.lt.s32.totalorder %v953, 0
        %v955 = vsub.s32 0, %v953
        %v956 = vsel %vm954, %v955, %v953
        %v957 = vclz %v956
        %v958 = vsub.s32 %v957, 2
        %vm959 = vcmp.gt.s32.totalorder 0, %v958
        %v960 = vsel %vm959, 0, %v958
        %v961 = vsub.s32 32, %v960
        %v962 = vshll.u32 %v953, %v960
        %v963 = vshrl.u32 %v945, %v961
        %v964 = vor.u32 %v962, %v963
        %v965 = vsub.s32 4294967266, %v960
        %v966 = vadd.s32 %v965, 127
        %v967 = vshll.u32 %v966, 23
        %v968 = vor.u32 4788187, %v967
        %v969 = vand.u32 2147483647, %v968
        %v971 = vcvt.s32.f32 %v964
        %v972 = vmul.f32 %v971, %v969
        %v973 = vxor.u32 %v972, 2147483648
        %v974 = vsel %vm891, %v973, %v972
        %v975 = vsub.s32 4, %v951
        %v976 = vsel %vm891, %v975, %v951
        %v977 = vsel %vm890, %v259, %v974
        %v978 = vsel %vm890, 0, %v976
        %v979 = vcosq.f32.pop %v977
        %v980 = vsinq.f32.pop %v977
        %vm981 = vweird.f32 %v259
        %v982 = vand.u32 %v978, 3
        %vm983 = vcmp.lt.s32.totalorder %v982, 2
        %vm984 = vcmp.eq.s32.totalorder %v982, 0
        %v985 = vxor.u32 %v980, 2147483648
        %v986 = vsel %vm984, %v979, %v985
        %vm987 = vcmp.eq.s32.totalorder %v982, 2
        %v988 = vxor.u32 %v979, 2147483648
        %v989 = vsel %vm987, %v988, %v980
        %v990 = vsel %vm983, %v986, %v989
        %v991 = vsel %vm981, nan, %v990
        %v992 = vand.u32 2147483647, %v260
        %vm993 = vcmp.le.f32.partialorder %v992, 0.7853982
        %vm994 = vcmp.lt.s32.totalorder %v260, 0
        %v995 = vand.u32 %v260, 2139095040
        %v996 = vshrl.u32 %v995, 23
        %v997 = vsub.s32 %v996, 127
        %v998 = vand.u32 2147483647, %v260
        %v999 = vand.u32 %v998, 8388607
        %v1000 = vor.u32 %v999, 8388608
        %v1001 = vsub.s32 0, %v1000
        %v1002 = vadd.s32 %v997, 1
        %vm1003 = vcmp.gt.s32.totalorder %v1002, 0
        %v1004 = vsel %vm1003, %v1002, 0
        %v1005 = vshrl.u32 %v1004, 5
        %v1006 = vand.u32 %v1004, 31
        %v1007 = vsub.s32 32, %v1006
        %v1008 = vshrl.u32 683565275, %v1007
        %v1009 = vshll.u32 683565275, %v1006
        %v1010 = vshrl.u32 2475754826, %v1007
        %v1011 = vor.u32 %v1009, %v1010
        %v1012 = vshll.u32 2475754826, %v1006
        %v1013 = vshrl.u32 2131351028, %v1007
        %v1014 = vor.u32 %v1012, %v1013
        %v1015 = vshll.u32 2131351028, %v1006
        %v1016 = vshrl.u32 2102212464, %v1007
        %v1017 = vor.u32 %v1015, %v1016
        %v1018 = vshll.u32 2102212464, %v1006
        %v1019 = vshrl.u32 920167782, %v1007
        %v1020 = vor.u32 %v1018, %v1019
        %v1021 = vshll.u32 920167782, %v1006
        %v1022 = vshrl.u32 1326507024, %v1007
        %v1023 = vor.u32 %v1021, %v1022
        %vm1024 = vcmp.lt.s32.totalorder %v1005, 1
        %vm1025 = vcmp.lt.s32.totalorder %v1005, 2
        %vm1026 = vcmp.lt.s32.totalorder %v1005, 3
        %vm1027 = vcmp.lt.s32.totalorder %v1005, 4
        %v1028 = vsel %vm1024, %v1008, %v1011
        %v1029 = vsel %vm1027, %v1017, 2102212464
        %v1030 = vsel %vm1026, %v1014, %v1029
        %v1031 = vsel %vm1025, %v1028, %v1030
        %v1032 = vsel %vm1024, %v1011, %v1014
        %v1033 = vsel %vm1027, %v1020, 920167782
        %v1034 = vsel %vm1026, %v1017, %v1033
        %v1035 = vsel %vm1025, %v1032, %v1034
        %v1036 = vsel %vm1024, %v1014, %v1017
        %v1037 = vsel %vm1027, %v1023, 1326507024
        %v1038 = vsel %vm1026, %v1020, %v1037
        %v1039 = vsel %vm1025, %v1036, %v1038
        %v1040 = vshll.u32 %v1000, 8
        %v1041 = vmul.u32.u64.compose %v1040, %v1039
        %v1042 = vextract.low.u32 %v1041
        %v1043 = vextract.high.u32 %v1041
        %v1044 = vmul.u32.u64.compose %v1040, %v1035
        %v1045 = vextract.low.u32 %v1044
        %v1046 = vextract.high.u32 %v1044
        %v1047 = vmul.u32 %v1040, %v1031
        %v1048 = vadd.s32 %v1043, %v1045
        %vm1049 = vc.u32 %v1043, %v1045
        %v1050 = vadd.s32 %v1046, 1
        %v1051 = vsel %vm1049, %v1050, %v1046
        %v1052 = vadd.s32 %v1047, %v1051
        %v1053 = vadd.s32 %v1052, 536870912
        %v1054 = vshrl.u32 %v1053, 30
        %v1055 = vshll.u32 %v1054, 30
        %v1056 = vsub.s32 %v1052, %v1055
        %vm1057 = vcmp.lt.s32.totalorder %v1056, 0
        %v1058 = vsub.s32 0, %v1056
        %v1059 = vsel %vm1057, %v1058, %v1056
        %v1060 = vclz %v1059
        %v1061 = vsub.s32 %v1060, 2
        %vm1062 = vcmp.gt.s32.totalorder 0, %v1061
        %v1063 = vsel %vm1062, 0, %v1061
        %v1064 = vsub.s32 32, %v1063
        %v1065 = vshll.u32 %v1056, %v1063
        %v1066 = vshrl.u32 %v1048, %v1064
        %v1067 = vor.u32 %v1065, %v1066
        %v1068 = vsub.s32 4294967266, %v1063
        %v1069 = vadd.s32 %v1068, 127
        %v1070 = vshll.u32 %v1069, 23
        %v1071 = vor.u32 4788187, %v1070
        %v1072 = vand.u32 2147483647, %v1071
        %v1074 = vcvt.s32.f32 %v1067
        %v1075 = vmul.f32 %v1074, %v1072
        %v1076 = vxor.u32 %v1075, 2147483648
        %v1077 = vsel %vm994, %v1076, %v1075
        %v1078 = vsub.s32 4, %v1054
        %v1079 = vsel %vm994, %v1078, %v1054
        %v1080 = vsel %vm993, %v260, %v1077
        %v1081 = vsel %vm993, 0, %v1079
        %v1082 = vcosq.f32.pop %v1080
        %v1083 = vsinq.f32.pop %v1080
        %vm1084 = vweird.f32 %v260
        %v1085 = vand.u32 %v1081, 3
        %vm1086 = vcmp.lt.s32.totalorder %v1085, 2
        %vm1087 = vcmp.eq.s32.totalorder %v1085, 0
        %v1088 = vxor.u32 %v1083, 2147483648
        %v1089 = vsel %vm1087, %v1082, %v1088
        %vm1090 = vcmp.eq.s32.totalorder %v1085, 2
        %v1091 = vxor.u32 %v1082, 2147483648
        %v1092 = vsel %vm1090, %v1091, %v1083
        %v1093 = vsel %vm1086, %v1089, %v1092
        %v1094 = vsel %vm1084, nan, %v1093
        %1095 = vst [vmem:[#allocation2 + $0x30] sm:$0xff] %v991
        %1096 = vst [vmem:[#allocation2 + $0x38] sm:$0xff] %v1094
        %v1097 = vld [vmem:[%s3] sm:$0xff]
        %v1098 = vld [vmem:[%s3 + $0x8] sm:$0xff]
        %v1099 = vld [vmem:[%s3 + $0x10] sm:$0xff]
        %v1100 = vld [vmem:[%s3 + $0x18] sm:$0xff]
        %v1101 = vld [vmem:[%s3 + $0x20] sm:$0xff]
        %v1102 = vld [vmem:[%s3 + $0x28] sm:$0xff]
        %v1103 = vld [vmem:[%s3 + $0x30] sm:$0xff]
        %v1104 = vld [vmem:[%s3 + $0x38] sm:$0xff]
        %v1105 = vld [vmem:[#allocation2] sm:$0xff]
        %v1106 = vld [vmem:[#allocation2 + $0x8] sm:$0xff]
        %v1107 = vld [vmem:[#allocation2 + $0x10] sm:$0xff]
        %v1108 = vld [vmem:[#allocation2 + $0x18] sm:$0xff]
        %v1109 = vld [vmem:[#allocation2 + $0x20] sm:$0xff]
        %v1110 = vld [vmem:[#allocation2 + $0x28] sm:$0xff]
        %v1111 = vld [vmem:[#allocation2 + $0x30] sm:$0xff]
        %v1112 = vld [vmem:[#allocation2 + $0x38] sm:$0xff]
        %v1113 = vld [vmem:[%s4] sm:$0xff]
        %v1114 = vld [vmem:[%s4 + $0x8] sm:$0xff]
        %v1115 = vld [vmem:[%s4 + $0x10] sm:$0xff]
        %v1116 = vld [vmem:[%s4 + $0x18] sm:$0xff]
        %v1117 = vld [vmem:[%s4 + $0x20] sm:$0xff]
        %v1118 = vld [vmem:[%s4 + $0x28] sm:$0xff]
        %v1119 = vld [vmem:[%s4 + $0x30] sm:$0xff]
        %v1120 = vld [vmem:[%s4 + $0x38] sm:$0xff]
        %1122 = vset.pattern.permute.xlu0 0
        %1123 = vperm.xlu0 %1122, %v1113
        %v1124 = vpop.permute.xlu0 %1123
        %1127 = vset.pattern.permute.xlu0 0
        %1128 = vperm.xlu0 %1127, %v1114
        %v1129 = vpop.permute.xlu0 %1128
        %1132 = vset.pattern.permute.xlu0 0
        %1133 = vperm.xlu0 %1132, %v1115
        %v1134 = vpop.permute.xlu0 %1133
        %1137 = vset.pattern.permute.xlu0 0
        %1138 = vperm.xlu0 %1137, %v1116
        %v1139 = vpop.permute.xlu0 %1138
        %1142 = vset.pattern.permute.xlu0 0
        %1143 = vperm.xlu0 %1142, %v1117
        %v1144 = vpop.permute.xlu0 %1143
        %1147 = vset.pattern.permute.xlu0 0
        %1148 = vperm.xlu0 %1147, %v1118
        %v1149 = vpop.permute.xlu0 %1148
        %1152 = vset.pattern.permute.xlu0 0
        %1153 = vperm.xlu0 %1152, %v1119
        %v1154 = vpop.permute.xlu0 %1153
        %1157 = vset.pattern.permute.xlu0 0
        %1158 = vperm.xlu0 %1157, %v1120
        %v1159 = vpop.permute.xlu0 %1158
        %vm1161 = vcmask 523264
        %v1163 = vsel %vm1161, %v1097, 0
        %v1166 = vsel %vm1161, %v1098, 0
        %v1169 = vsel %vm1161, %v1099, 0
        %v1172 = vsel %vm1161, %v1100, 0
        %v1175 = vsel %vm1161, %v1101, 0
        %v1178 = vsel %vm1161, %v1102, 0
        %v1181 = vsel %vm1161, %v1103, 0
        %v1184 = vsel %vm1161, %v1104, 0
        %1186 = vmatprep.subr.mxu0 0.0
        %1187 = vmatpush1.msra.mxu0 0.0
        %1188 = vmatprep.subr.mxu0 0.0
        %1189 = vmatpush1.msra.mxu0 0.0
        %1190 = vmatprep.subr.mxu0 0.0
        %1191 = vmatpush1.msra.mxu0 0.0
        %1192 = vmatprep.subr.mxu0 0.0
        %1193 = vmatpush1.msra.mxu0 0.0
        %1194 = vmatprep.subr.mxu0 0.0
        %1195 = vmatpush1.msra.mxu0 0.0
        %1196 = vmatprep.subr.mxu0 0.0
        %1197 = vmatpush1.msra.mxu0 0.0
        %1198 = vmatprep.subr.mxu0 0.0
        %1199 = vmatpush1.msra.mxu0 0.0
        %1200 = vmatprep.subr.mxu0 0.0
        %1201 = vmatpush1.msra.mxu0 0.0
        %1202 = vmatprep.subr.mxu0 0.0
        %1203 = vmatpush1.msra.mxu0 %v1112
        %1204 = vmatprep.subr.mxu0 0.0
        %1205 = vmatpush1.msra.mxu0 %v1111
        %1206 = vmatprep.subr.mxu0 0.0
        %1207 = vmatpush1.msra.mxu0 %v1110
        %1208 = vmatprep.subr.mxu0 0.0
        %1209 = vmatpush1.msra.mxu0 %v1109
        %1210 = vmatprep.subr.mxu0 0.0
        %1211 = vmatpush1.msra.mxu0 %v1108
        %1212 = vmatprep.subr.mxu0 0.0
        %1213 = vmatpush1.msra.mxu0 %v1107
        %1214 = vmatprep.subr.mxu0 0.0
        %1215 = vmatpush1.msra.mxu0 %v1106
        %1216 = vmatprep.subr.mxu0 0.0
        %1217 = vmatpush1.msra.mxu0 %v1105
        %1218 = vmatprep.subr.mxu0 0.0
        %1219 = vmatpush2.msra.mxu0 0.0
        %1220 = vmatprep.subr.mxu0 0.0
        %1221 = vmatpush2.msra.mxu0 0.0
        %1222 = vmatprep.subr.mxu0 0.0
        %1223 = vmatpush2.msra.mxu0 0.0
        %1224 = vmatprep.subr.mxu0 0.0
        %1225 = vmatpush2.msra.mxu0 0.0
        %1226 = vmatprep.subr.mxu0 0.0
        %1227 = vmatpush2.msra.mxu0 0.0
        %1228 = vmatprep.subr.mxu0 0.0
        %1229 = vmatpush2.msra.mxu0 0.0
        %1230 = vmatprep.subr.mxu0 0.0
        %1231 = vmatpush2.msra.mxu0 0.0
        %1232 = vmatprep.subr.mxu0 0.0
        %1233 = vmatpush2.msra.mxu0 0.0
        %1234 = vmatprep.subr.mxu0 0.0
        %1235 = vmatpush2.msra.mxu0 0.0
        %1236 = vmatprep.subr.mxu0 0.0
        %1237 = vmatpush2.msra.mxu0 0.0
        %1238 = vmatprep.subr.mxu0 0.0
        %1239 = vmatpush2.msra.mxu0 0.0
        %1240 = vmatprep.subr.mxu0 0.0
        %1241 = vmatpush2.msra.mxu0 0.0
        %1242 = vmatprep.subr.mxu0 0.0
        %1243 = vmatpush2.msra.mxu0 0.0
        %1244 = vmatprep.subr.mxu0 0.0
        %1245 = vmatpush2.msra.mxu0 0.0
        %1246 = vmatprep.subr.mxu0 0.0
        %1247 = vmatpush2.msra.mxu0 0.0
        %1248 = vmatprep.subr.mxu0 0.0
        %1249 = vmatpush2.msra.mxu0 0.0
        %1250 = vmatprep.mubr.f32.mxu0 0.0
        %1251 = vmatmul.mubr.f32.gmra.mxu0 %v1163
        %v1252 = vpop.f32.mrf.mxu0
        %v1253 = vadd.f32 %v1124, %v1252
        %v1254 = vpop.f32.mrf.mxu0
        %1255 = vmatprep.mubr.f32.mxu0 0.0
        %1256 = vmatmul.mubr.f32.gmra.mxu0 %v1166
        %v1257 = vpop.f32.mrf.mxu0
        %v1258 = vadd.f32 %v1129, %v1257
        %v1259 = vpop.f32.mrf.mxu0
        %1260 = vmatprep.mubr.f32.mxu0 0.0
        %1261 = vmatmul.mubr.f32.gmra.mxu0 %v1169
        %v1262 = vpop.f32.mrf.mxu0
        %v1263 = vadd.f32 %v1134, %v1262
        %v1264 = vpop.f32.mrf.mxu0
        %1265 = vmatprep.mubr.f32.mxu0 0.0
        %1266 = vmatmul.mubr.f32.gmra.mxu0 %v1172
        %v1267 = vpop.f32.mrf.mxu0
        %v1268 = vadd.f32 %v1139, %v1267
        %v1269 = vpop.f32.mrf.mxu0
        %1270 = vmatprep.mubr.f32.mxu0 0.0
        %1271 = vmatmul.mubr.f32.gmra.mxu0 %v1175
        %v1272 = vpop.f32.mrf.mxu0
        %v1273 = vadd.f32 %v1144, %v1272
        %v1274 = vpop.f32.mrf.mxu0
        %1275 = vmatprep.mubr.f32.mxu0 0.0
        %1276 = vmatmul.mubr.f32.gmra.mxu0 %v1178
        %v1277 = vpop.f32.mrf.mxu0
        %v1278 = vadd.f32 %v1149, %v1277
        %v1279 = vpop.f32.mrf.mxu0
        %1280 = vmatprep.mubr.f32.mxu0 0.0
        %1281 = vmatmul.mubr.f32.gmra.mxu0 %v1181
        %v1282 = vpop.f32.mrf.mxu0
        %v1283 = vadd.f32 %v1154, %v1282
        %v1284 = vpop.f32.mrf.mxu0
        %1285 = vmatprep.mubr.f32.mxu0 0.0
        %1286 = vmatmul.mubr.f32.gmra.mxu0 %v1184
        %v1287 = vpop.f32.mrf.mxu0
        %v1288 = vadd.f32 %v1159, %v1287
        %v1289 = vpop.f32.mrf.mxu0
        %1290 = vdwg.mxu0
        %1291 = vst [vmem:[%s224] sm:$0xff] %v1253
        %1292 = vst [vmem:[%s224 + $0x8] sm:$0xff] %v1258
        %1293 = vst [vmem:[%s224 + $0x10] sm:$0xff] %v1263
        %1294 = vst [vmem:[%s224 + $0x18] sm:$0xff] %v1268
        %1295 = vst [vmem:[%s224 + $0x20] sm:$0xff] %v1273
        %1296 = vst [vmem:[%s224 + $0x28] sm:$0xff] %v1278
        %1297 = vst [vmem:[%s224 + $0x30] sm:$0xff] %v1283
        %1298 = vst [vmem:[%s224 + $0x38] sm:$0xff] %v1288
        %s1299 = sand.u32 %s142, 1
        %s1300 = scalar_lea.sflag [#allocation4], %s1299
        %s1301 = sand.u32 %s142, 1
        %s1302 = smul.addr %s1301, 64
        %s1303 = scalar_lea.vmem [#allocation3], %s1302
        // Predicated region
        $region41: #{tpu_custom_call.1} parent=39 // pred_check
          %p1304 = pneg %p152
        $region42: #{tpu_custom_call.1} parent=39 // pred_check_branch
          %1306 = sbr.rel (%p1304) target = $region44
        $region43: #{tpu_custom_call.1} parent=39 // pred_region
          %s1308 = ssub.s32 1024, 1024
          %1309 = vsyncadd %s1300, %s1308
          %s1310 = smul.addr %s19, 128
          %s1311 = scalar_lea.hbm %s5, %s1310
          %s1312 = sshll.u32 %s1303, 4
          %s1313 = int_to_ptr.vmem [resolvable:$true] %s1312
          %1318 = dma.vmem_to_hbm [thread:$0]  %s1313, 1024, %s1311, %s1300, 128, 256, 8
        $region44: #{tpu_custom_call.1} parent=39 // pred_fallthru
          _
      $region40: #{tpu_custom_call.1} parent=5 // pred_fallthru
        _
      %p1319 = scmp.le.s32.totalorder 2, %s14
      // Predicated region
      $region45: #{tpu_custom_call.1} parent=5 // pred_check
        %p1320 = pneg %p1319
      $region46: #{tpu_custom_call.1} parent=5 // pred_check_branch
        %1322 = sbr.rel (%p1320) target = $region48
      $region47: #{tpu_custom_call.1} parent=5 // pred_region
        %s1323 = ssub.s32 %s14, 2
        // Predicated region
        $region49: #{tpu_custom_call.1} parent=47 // pred_check
          %p1324 = pneg %p158
        $region50: #{tpu_custom_call.1} parent=47 // pred_check_branch
          %1326 = sbr.rel (%p1324) target = $region52
        $region51: #{tpu_custom_call.1} parent=47 // pred_region
          %s1327 = sand.u32 %s143, 1
          %s1328 = scalar_lea.sflag [#allocation4], %s1327
          %s1329 = sand.u32 %s143, 1
          %s1330 = smul.addr %s1329, 64
          %s1331 = scalar_lea.vmem [#allocation3], %s1330
          %1332 = dma.done %s1328, 1024
        $region52: #{tpu_custom_call.1} parent=47 // pred_fallthru
          _
      $region48: #{tpu_custom_call.1} parent=5 // pred_fallthru
        _
    $region6: #{tpu_custom_call.1} parent=1 // loop_footer
      %s18 = sadd.s32 1, %s14
    $region7: #{tpu_custom_call.1} parent=1 // loop_footer_branch
      %13 = sbr.rel target = $region3
    $region8: #{tpu_custom_call.1} parent=1 // loop_exit
      _
    %1333 = vsyncpa [#allocation4], 1
    %s1334 = scalar_lea.sflag [#allocation4], 1
    %1335 = vsyncpa %s1334, 1

</llo_original>
